<compile_context>
chip_gen: v5e
topology: v5e:2x2
jax: 0.10.0
libtpu: 0.0.40
codegen_flags: <defaults>
</compile_context>

<pallas_src>
import functools

import jax
import jax.numpy as jnp
from jax.experimental import pallas as pl
from jax.experimental.pallas import tpu as pltpu


def _residual_block_kernel(xt_ref, w1_ref, b1_ref, w2_ref, b2_ref, o_ref,
                           *, H, W, C, tile_h, res_scale):
    """One (batch, row-tile) pair per grid step.

    xt_ref : (1, 1, tile_h+4, W+2, C) f32   padded input tile, 2-row halo
    w*_ref : (9*C, C)                 bf16  im2col-flattened conv weights
    b*_ref : (1, C)                   f32   conv biases
    o_ref  : (1, tile_h, W, C)        f32   output tile
    """
    th = tile_h
    the = th + 2                       # h rows computed (1-row halo each side)
    t = pl.program_id(1)

    x = xt_ref[0, 0]                   # (th+4, W+2, C), f32

    # ---- conv1 over the extended rows: im2col -> one MXU matmul (K = 9C) ----
    taps1 = [x[dy:dy + the, dx:dx + W, :].reshape(the * W, C)
             for dy in range(3) for dx in range(3)]
    slab1 = jnp.concatenate(taps1, axis=-1).astype(jnp.bfloat16)   # (the*W, 9C)
    h = jnp.dot(slab1, w1_ref[...], preferred_element_type=jnp.float32)
    h = jnp.maximum(h + b1_ref[0], 0.0).reshape(the, W, C)         # f32 ReLU

    # Rows of h that fall outside the image must be ZERO for conv2 (the module
    # zero-pads h; it does not evaluate conv1 at out-of-range rows).
    row_g = jax.lax.broadcasted_iota(jnp.int32, (the, 1, 1), 0) + (t * th - 1)
    h = jnp.where((row_g >= 0) & (row_g < H), h, 0.0)

    # ---- conv2: zero-pad h in W functionally, im2col -> one MXU matmul ----
    zcol = jnp.zeros((the, 1, C), jnp.float32)
    hp = jnp.concatenate([zcol, h, zcol], axis=1)                  # (the, W+2, C)
    taps2 = [hp[dy:dy + th, dx:dx + W, :].reshape(th * W, C)
             for dy in range(3) for dx in range(3)]
    slab2 = jnp.concatenate(taps2, axis=-1).astype(jnp.bfloat16)   # (th*W, 9C)
    out = jnp.dot(slab2, w2_ref[...], preferred_element_type=jnp.float32)
    out = (out + b2_ref[0]).reshape(th, W, C)

    # ---- residual add (identity = unpadded centre of the input tile) ----
    identity = x[2:2 + th, 1:1 + W, :]
    # TODO(synk): for C < 128 a lane-dense (th, W*C) output layout would avoid
    # masked partial stores, but the required in-kernel (th,W,C)->(th,W*C)
    # relayout is not reliably lowerable, so keep the natural NHWC store.
    o_ref[0] = identity + out * res_scale


def residual_block_nobn(x_nchw, w1, b1, w2, b2, res_scale=1.0, tile_h=None):
    """x_nchw: (N, C, H, W) f32; w1/w2: HWIO (3, 3, C, C); b1/b2: (C,)."""
    N, C, H, W = x_nchw.shape
    if tile_h is None:
        tile_h = H
        for cand in (32, 16, 8):
            if H > cand and H % cand == 0:
                tile_h = cand
                break
    assert H % tile_h == 0, "tile_h must divide H"
    T = H // tile_h

    # NHWC, zero-pad H by 2 / W by 1, extract overlapping row tiles with a
    # 2-row halo (overlap-recompute of one conv1 output row per side).
    # NOTE: for production, an element-indexed / manual-DMA halo would avoid
    # materialising the duplicated halo rows in HBM; kept simple & robust here.
    x = jnp.transpose(x_nchw, (0, 2, 3, 1))                        # (N, H, W, C)
    xpad = jnp.pad(x, ((0, 0), (2, 2), (1, 1), (0, 0)))            # (N, H+4, W+2, C)
    x_tiles = jnp.stack(
        [xpad[:, t * tile_h:t * tile_h + tile_h + 4] for t in range(T)],
        axis=1)                                                    # (N, T, th+4, W+2, C)

    w1f = w1.reshape(9 * C, C).astype(jnp.bfloat16)                # im2col weight layout
    w2f = w2.reshape(9 * C, C).astype(jnp.bfloat16)
    b1r = b1.reshape(1, C).astype(jnp.float32)
    b2r = b2.reshape(1, C).astype(jnp.float32)

    kernel = functools.partial(_residual_block_kernel, H=H, W=W, C=C,
                               tile_h=tile_h, res_scale=float(res_scale))

    out_nhwc = pl.pallas_call(
        kernel,
        out_shape=jax.ShapeDtypeStruct((N, H, W, C), jnp.float32),
        grid_spec=pltpu.PrefetchScalarGridSpec(
            num_scalar_prefetch=0,
            grid=(N, T),
            in_specs=[
                pl.BlockSpec((1, 1, tile_h + 4, W + 2, C),
                             lambda n, t: (n, t, 0, 0, 0)),
                pl.BlockSpec((9 * C, C), lambda n, t: (0, 0)),
                pl.BlockSpec((1, C), lambda n, t: (0, 0)),
                pl.BlockSpec((9 * C, C), lambda n, t: (0, 0)),
                pl.BlockSpec((1, C), lambda n, t: (0, 0)),
            ],
            out_specs=pl.BlockSpec((1, tile_h, W, C),
                                   lambda n, t: (n, t, 0, 0)),
        ),
        compiler_params=pltpu.CompilerParams(
            dimension_semantics=("parallel", "parallel"),
            vmem_limit_bytes=48 * 1024 * 1024),
    )(x_tiles, w1f, b1r, w2f, b2r)

    return jnp.transpose(out_nhwc, (0, 3, 1, 2))                   # back to NCHW


def _reference(x_nchw, w1, b1, w2, b2, res_scale, conv_dtype=jnp.float32):
    """Plain-JAX reference. conv_dtype=bf16 mirrors the kernel's MXU operand
    rounding (f32 accumulation, f32 bias/ReLU/residual)."""
    def q(a):
        return a.astype(conv_dtype).astype(jnp.float32)

    dn = jax.lax.conv_dimension_numbers(x_nchw.shape, (3, 3, 1, 1),
                                        ("NCHW", "HWIO", "NCHW"))

    def conv(a, w, b):
        y = jax.lax.conv_general_dilated(q(a), q(w), (1, 1), ((1, 1), (1, 1)),
                                         dimension_numbers=dn)
        return y + b.reshape(1, -1, 1, 1)

    h = jnp.maximum(conv(x_nchw, w1, b1), 0.0)
    return x_nchw + conv(h, w2, b2) * res_scale


if __name__ == "__main__":
    # Small shapes consistent with the module (num_feat=C).
    N, C, H, W = 2, 16, 16, 16
    res_scale = 1.0

    key = jax.random.PRNGKey(0)
    k1, k2, kx = jax.random.split(key, 3)

    # Deterministic init emulating default_init_weights(scale=0.1):
    # kaiming-normal-ish weights scaled by 0.1, zero biases.
    fan_in = 3 * 3 * C
    std = (2.0 / fan_in) ** 0.5
    w1 = jax.random.normal(k1, (3, 3, C, C), jnp.float32) * std * 0.1
    w2 = jax.random.normal(k2, (3, 3, C, C), jnp.float32) * std * 0.1
    b1 = jnp.zeros((C,), jnp.float32)
    b2 = jnp.zeros((C,), jnp.float32)

    x = jax.random.normal(kx, (N, C, H, W), jnp.float32)

    out = residual_block_nobn(x, w1, b1, w2, b2, res_scale)
    out = jax.block_until_ready(out)
    assert out.shape == (N, C, H, W)

    # Strict check vs a reference with matched bf16 MXU-operand rounding.
    ref_bf16 = _reference(x, w1, b1, w2, b2, res_scale, conv_dtype=jnp.bfloat16)
    assert jnp.allclose(out, ref_bf16, atol=1e-4, rtol=1e-3), \
        "mismatch vs bf16-matched reference"

    # Looser semantic sanity check vs the pure-f32 module reference.
    ref_f32 = _reference(x, w1, b1, w2, b2, res_scale, conv_dtype=jnp.float32)
    assert jnp.allclose(out, ref_f32, atol=5e-3, rtol=5e-3), \
        "mismatch vs f32 reference"

    print("KERNEL_OK")
</pallas_src>

<mosaic_0001>
module attributes {stable_mosaic.version = 11 : i64} {
  func.func @_residual_block_kernel(%arg0: i32, %arg1: i32, %arg2: memref<1x1x12x18x16xf32, #tpu.memory_space<vmem>>, %arg3: memref<144x16xbf16, #tpu.memory_space<vmem>>, %arg4: memref<1x16xf32, #tpu.memory_space<vmem>>, %arg5: memref<144x16xbf16, #tpu.memory_space<vmem>>, %arg6: memref<1x16xf32, #tpu.memory_space<vmem>>, %arg7: memref<1x8x16x16xf32, #tpu.memory_space<vmem>>) attributes {dimension_semantics = [#tpu.dimension_semantics<parallel>, #tpu.dimension_semantics<parallel>], iteration_bounds = array<i64: 2, 2>, scalar_prefetch = 0 : i64, scratch_operands = 0 : i64, tpu.core_type = #tpu.core_type<tc>, window_params = [{transform_indices = @transform_0, window_bounds = array<i64: 1, 1, 12, 18, 16>}, {pipeline_mode = #tpu.pipeline_mode<synchronous>, transform_indices = @transform_1, window_bounds = array<i64: 144, 16>}, {pipeline_mode = #tpu.pipeline_mode<synchronous>, transform_indices = @transform_2, window_bounds = array<i64: 1, 16>}, {pipeline_mode = #tpu.pipeline_mode<synchronous>, transform_indices = @transform_3, window_bounds = array<i64: 144, 16>}, {pipeline_mode = #tpu.pipeline_mode<synchronous>, transform_indices = @transform_4, window_bounds = array<i64: 1, 16>}, {transform_indices = @transform_5, window_bounds = array<i64: 1, 8, 16, 16>}]} {
    %c0 = arith.constant 0 : index
    %c0_0 = arith.constant 0 : index
    %c0_1 = arith.constant 0 : index
    %c0_2 = arith.constant 0 : index
    %c0_3 = arith.constant 0 : index
    %0 = vector.load %arg2[%c0, %c0_0, %c0_1, %c0_2, %c0_3] : memref<1x1x12x18x16xf32, #tpu.memory_space<vmem>>, vector<1x1x12x18x16xf32>
    %1 = vector.shape_cast %0 : vector<1x1x12x18x16xf32> to vector<12x18x16xf32>
    %2 = vector.extract_strided_slice %1 {offsets = [0, 0, 0], sizes = [10, 16, 16], strides = [1, 1, 1]} : vector<12x18x16xf32> to vector<10x16x16xf32>
    %3 = vector.shape_cast %2 : vector<10x16x16xf32> to vector<160x16xf32>
    %4 = vector.extract_strided_slice %1 {offsets = [0, 1, 0], sizes = [10, 16, 16], strides = [1, 1, 1]} : vector<12x18x16xf32> to vector<10x16x16xf32>
    %5 = vector.shape_cast %4 : vector<10x16x16xf32> to vector<160x16xf32>
    %6 = vector.extract_strided_slice %1 {offsets = [0, 2, 0], sizes = [10, 16, 16], strides = [1, 1, 1]} : vector<12x18x16xf32> to vector<10x16x16xf32>
    %7 = vector.shape_cast %6 : vector<10x16x16xf32> to vector<160x16xf32>
    %8 = vector.extract_strided_slice %1 {offsets = [1, 0, 0], sizes = [10, 16, 16], strides = [1, 1, 1]} : vector<12x18x16xf32> to vector<10x16x16xf32>
    %9 = vector.shape_cast %8 : vector<10x16x16xf32> to vector<160x16xf32>
    %10 = vector.extract_strided_slice %1 {offsets = [1, 1, 0], sizes = [10, 16, 16], strides = [1, 1, 1]} : vector<12x18x16xf32> to vector<10x16x16xf32>
    %11 = vector.shape_cast %10 : vector<10x16x16xf32> to vector<160x16xf32>
    %12 = vector.extract_strided_slice %1 {offsets = [1, 2, 0], sizes = [10, 16, 16], strides = [1, 1, 1]} : vector<12x18x16xf32> to vector<10x16x16xf32>
    %13 = vector.shape_cast %12 : vector<10x16x16xf32> to vector<160x16xf32>
    %14 = vector.extract_strided_slice %1 {offsets = [2, 0, 0], sizes = [10, 16, 16], strides = [1, 1, 1]} : vector<12x18x16xf32> to vector<10x16x16xf32>
    %15 = vector.shape_cast %14 : vector<10x16x16xf32> to vector<160x16xf32>
    %16 = vector.extract_strided_slice %1 {offsets = [2, 1, 0], sizes = [10, 16, 16], strides = [1, 1, 1]} : vector<12x18x16xf32> to vector<10x16x16xf32>
    %17 = vector.shape_cast %16 : vector<10x16x16xf32> to vector<160x16xf32>
    %18 = vector.extract_strided_slice %1 {offsets = [2, 2, 0], sizes = [10, 16, 16], strides = [1, 1, 1]} : vector<12x18x16xf32> to vector<10x16x16xf32>
    %19 = vector.shape_cast %18 : vector<10x16x16xf32> to vector<160x16xf32>
    %20 = tpu.concatenate %3, %5, %7, %9, %11, %13, %15, %17, %19 in 1 : vector<160x16xf32>, vector<160x16xf32>, vector<160x16xf32>, vector<160x16xf32>, vector<160x16xf32>, vector<160x16xf32>, vector<160x16xf32>, vector<160x16xf32>, vector<160x16xf32> -> vector<160x144xf32>
    %21 = arith.truncf %20 : vector<160x144xf32> to vector<160x144xbf16>
    %c0_4 = arith.constant 0 : index
    %c0_5 = arith.constant 0 : index
    %22 = vector.load %arg3[%c0_4, %c0_5] : memref<144x16xbf16, #tpu.memory_space<vmem>>, vector<144x16xbf16>
    %cst = arith.constant dense<0.000000e+00> : vector<160x16xf32>
    %23 = tpu.matmul %21, %22, %cst {dimension_numbers = #tpu.dot_dimension_numbers<[1], [0], [0], [1], [0, 0, 1, 1], [], []>} : vector<160x144xbf16>, vector<144x16xbf16>, vector<160x16xf32> -> vector<160x16xf32>
    %c0_6 = arith.constant 0 : index
    %c0_7 = arith.constant 0 : index
    %24 = vector.load %arg4[%c0_6, %c0_7] : memref<1x16xf32, #tpu.memory_space<vmem>>, vector<1x16xf32>
    %25 = vector.shape_cast %24 : vector<1x16xf32> to vector<16xf32>
    %26 = vector.shape_cast %25 : vector<16xf32> to vector<1x16xf32>
    %27 = vector.broadcast %26 : vector<1x16xf32> to vector<160x16xf32>
    %28 = arith.addf %23, %27 : vector<160x16xf32>
    %cst_8 = arith.constant 0.000000e+00 : f32
    %29 = vector.broadcast %cst_8 : f32 to vector<160x16xf32>
    %30 = arith.maximumf %28, %29 : vector<160x16xf32>
    %31 = vector.shape_cast %30 : vector<160x16xf32> to vector<10x16x16xf32>
    %32 = tpu.iota {dimensions = array<i32: 0>} : vector<10x1x1xi32>
    %c8_i32 = arith.constant 8 : i32
    %33 = arith.muli %arg1, %c8_i32 : i32
    %c1_i32 = arith.constant 1 : i32
    %34 = arith.subi %33, %c1_i32 : i32
    %35 = vector.broadcast %34 : i32 to vector<10x1x1xi32>
    %36 = arith.addi %32, %35 : vector<10x1x1xi32>
    %c0_i32 = arith.constant 0 : i32
    %37 = vector.broadcast %c0_i32 : i32 to vector<10x1x1xi32>
    %38 = arith.cmpi sge, %36, %37 : vector<10x1x1xi32>
    %c16_i32 = arith.constant 16 : i32
    %39 = vector.broadcast %c16_i32 : i32 to vector<10x1x1xi32>
    %40 = arith.cmpi slt, %36, %39 : vector<10x1x1xi32>
    %41 = arith.andi %38, %40 : vector<10x1x1xi1>
    %cst_9 = arith.constant 0.000000e+00 : f32
    %42 = vector.shape_cast %41 : vector<10x1x1xi1> to vector<10x1x1xi1>
    %43 = vector.broadcast %42 : vector<10x1x1xi1> to vector<10x16x16xi1>
    %44 = vector.broadcast %cst_9 : f32 to vector<10x16x16xf32>
    %45 = arith.select %43, %31, %44 : vector<10x16x16xi1>, vector<10x16x16xf32>
    %cst_10 = arith.constant 0.000000e+00 : f32
    %46 = vector.broadcast %cst_10 : f32 to vector<10x1x16xf32>
    %47 = tpu.concatenate %46, %45, %46 in 1 : vector<10x1x16xf32>, vector<10x16x16xf32>, vector<10x1x16xf32> -> vector<10x18x16xf32>
    %48 = vector.extract_strided_slice %47 {offsets = [0, 0, 0], sizes = [8, 16, 16], strides = [1, 1, 1]} : vector<10x18x16xf32> to vector<8x16x16xf32>
    %49 = vector.shape_cast %48 : vector<8x16x16xf32> to vector<128x16xf32>
    %50 = vector.extract_strided_slice %47 {offsets = [0, 1, 0], sizes = [8, 16, 16], strides = [1, 1, 1]} : vector<10x18x16xf32> to vector<8x16x16xf32>
    %51 = vector.shape_cast %50 : vector<8x16x16xf32> to vector<128x16xf32>
    %52 = vector.extract_strided_slice %47 {offsets = [0, 2, 0], sizes = [8, 16, 16], strides = [1, 1, 1]} : vector<10x18x16xf32> to vector<8x16x16xf32>
    %53 = vector.shape_cast %52 : vector<8x16x16xf32> to vector<128x16xf32>
    %54 = vector.extract_strided_slice %47 {offsets = [1, 0, 0], sizes = [8, 16, 16], strides = [1, 1, 1]} : vector<10x18x16xf32> to vector<8x16x16xf32>
    %55 = vector.shape_cast %54 : vector<8x16x16xf32> to vector<128x16xf32>
    %56 = vector.extract_strided_slice %47 {offsets = [1, 1, 0], sizes = [8, 16, 16], strides = [1, 1, 1]} : vector<10x18x16xf32> to vector<8x16x16xf32>
    %57 = vector.shape_cast %56 : vector<8x16x16xf32> to vector<128x16xf32>
    %58 = vector.extract_strided_slice %47 {offsets = [1, 2, 0], sizes = [8, 16, 16], strides = [1, 1, 1]} : vector<10x18x16xf32> to vector<8x16x16xf32>
    %59 = vector.shape_cast %58 : vector<8x16x16xf32> to vector<128x16xf32>
    %60 = vector.extract_strided_slice %47 {offsets = [2, 0, 0], sizes = [8, 16, 16], strides = [1, 1, 1]} : vector<10x18x16xf32> to vector<8x16x16xf32>
    %61 = vector.shape_cast %60 : vector<8x16x16xf32> to vector<128x16xf32>
    %62 = vector.extract_strided_slice %47 {offsets = [2, 1, 0], sizes = [8, 16, 16], strides = [1, 1, 1]} : vector<10x18x16xf32> to vector<8x16x16xf32>
    %63 = vector.shape_cast %62 : vector<8x16x16xf32> to vector<128x16xf32>
    %64 = vector.extract_strided_slice %47 {offsets = [2, 2, 0], sizes = [8, 16, 16], strides = [1, 1, 1]} : vector<10x18x16xf32> to vector<8x16x16xf32>
    %65 = vector.shape_cast %64 : vector<8x16x16xf32> to vector<128x16xf32>
    %66 = tpu.concatenate %49, %51, %53, %55, %57, %59, %61, %63, %65 in 1 : vector<128x16xf32>, vector<128x16xf32>, vector<128x16xf32>, vector<128x16xf32>, vector<128x16xf32>, vector<128x16xf32>, vector<128x16xf32>, vector<128x16xf32>, vector<128x16xf32> -> vector<128x144xf32>
    %67 = arith.truncf %66 : vector<128x144xf32> to vector<128x144xbf16>
    %c0_11 = arith.constant 0 : index
    %c0_12 = arith.constant 0 : index
    %68 = vector.load %arg5[%c0_11, %c0_12] : memref<144x16xbf16, #tpu.memory_space<vmem>>, vector<144x16xbf16>
    %cst_13 = arith.constant dense<0.000000e+00> : vector<128x16xf32>
    %69 = tpu.matmul %67, %68, %cst_13 {dimension_numbers = #tpu.dot_dimension_numbers<[1], [0], [0], [1], [0, 0, 1, 1], [], []>} : vector<128x144xbf16>, vector<144x16xbf16>, vector<128x16xf32> -> vector<128x16xf32>
    %c0_14 = arith.constant 0 : index
    %c0_15 = arith.constant 0 : index
    %70 = vector.load %arg6[%c0_14, %c0_15] : memref<1x16xf32, #tpu.memory_space<vmem>>, vector<1x16xf32>
    %71 = vector.shape_cast %70 : vector<1x16xf32> to vector<16xf32>
    %72 = vector.shape_cast %71 : vector<16xf32> to vector<1x16xf32>
    %73 = vector.broadcast %72 : vector<1x16xf32> to vector<128x16xf32>
    %74 = arith.addf %69, %73 : vector<128x16xf32>
    %75 = vector.shape_cast %74 : vector<128x16xf32> to vector<8x16x16xf32>
    %76 = vector.extract_strided_slice %1 {offsets = [2, 1, 0], sizes = [8, 16, 16], strides = [1, 1, 1]} : vector<12x18x16xf32> to vector<8x16x16xf32>
    %cst_16 = arith.constant 1.000000e+00 : f32
    %77 = vector.broadcast %cst_16 : f32 to vector<8x16x16xf32>
    %78 = arith.mulf %75, %77 : vector<8x16x16xf32>
    %79 = arith.addf %76, %78 : vector<8x16x16xf32>
    %c0_17 = arith.constant 0 : index
    %c0_18 = arith.constant 0 : index
    %c0_19 = arith.constant 0 : index
    %c0_20 = arith.constant 0 : index
    %80 = vector.load %arg7[%c0_17, %c0_18, %c0_19, %c0_20] : memref<1x8x16x16xf32, #tpu.memory_space<vmem>>, vector<1x8x16x16xf32>
    %81 = vector.shape_cast %80 : vector<1x8x16x16xf32> to vector<8x16x16xf32>
    %82 = vector.shape_cast %79 : vector<8x16x16xf32> to vector<1x8x16x16xf32>
    tpu.vector_store %arg7[%c0_17, %c0_18, %c0_19, %c0_20], %82 {strides = array<i32>} : memref<1x8x16x16xf32, #tpu.memory_space<vmem>>, vector<1x8x16x16xf32>,
    return
  }
  func.func @transform_0(%arg0: i32, %arg1: i32) -> (i32, i32, i32, i32, i32) {
    %c0_i32 = arith.constant 0 : i32
    %c0_i32_0 = arith.constant 0 : i32
    %c0_i32_1 = arith.constant 0 : i32
    %c0_i32_2 = arith.constant 0 : i32
    return %arg0, %arg1, %c0_i32, %c0_i32_0, %c0_i32_1 : i32, i32, i32, i32, i32
  }
  func.func @transform_1(%arg0: i32, %arg1: i32) -> (i32, i32) {
    %c0_i32 = arith.constant 0 : i32
    %c0_i32_0 = arith.constant 0 : i32
    %c0_i32_1 = arith.constant 0 : i32
    return %c0_i32, %c0_i32_0 : i32, i32
  }
  func.func @transform_2(%arg0: i32, %arg1: i32) -> (i32, i32) {
    %c0_i32 = arith.constant 0 : i32
    %c0_i32_0 = arith.constant 0 : i32
    %c0_i32_1 = arith.constant 0 : i32
    return %c0_i32, %c0_i32_0 : i32, i32
  }
  func.func @transform_3(%arg0: i32, %arg1: i32) -> (i32, i32) {
    %c0_i32 = arith.constant 0 : i32
    %c0_i32_0 = arith.constant 0 : i32
    %c0_i32_1 = arith.constant 0 : i32
    return %c0_i32, %c0_i32_0 : i32, i32
  }
  func.func @transform_4(%arg0: i32, %arg1: i32) -> (i32, i32) {
    %c0_i32 = arith.constant 0 : i32
    %c0_i32_0 = arith.constant 0 : i32
    %c0_i32_1 = arith.constant 0 : i32
    return %c0_i32, %c0_i32_0 : i32, i32
  }
  func.func @transform_5(%arg0: i32, %arg1: i32) -> (i32, i32, i32, i32) {
    %c0_i32 = arith.constant 0 : i32
    %c0_i32_0 = arith.constant 0 : i32
    %c0_i32_1 = arith.constant 0 : i32
    return %arg0, %arg1, %c0_i32, %c0_i32_0 : i32, i32, i32, i32
  }
}

</mosaic_0001>

<llo_original>
// kernel: tpu_custom_call.1
$region0: #{tpu_custom_call.1}
  #allocation0 [shape = 'u32[]', space=smem, size = 0x4, offset = 0x4, fixed_abs, tag = 'smem constant byte address 0x4 - core index']
  #allocation1 [shape = 'u32[72,128]{1,0:T(1,128)}', space=vmem, size = 0x9000, scoped, tag = 'internal scratch']
  %s0 = inlined_call_operand.vmem [shape: f32[2,2,12,18,16], index: 0, kind: input, shape index: {}]
  %s1 = inlined_call_operand.vmem [shape: bf16[144,16], index: 1, kind: input, shape index: {}]
  %s2 = inlined_call_operand.vmem [shape: f32[1,16], index: 2, kind: input, shape index: {}]
  %s3 = inlined_call_operand.vmem [shape: bf16[144,16], index: 3, kind: input, shape index: {}]
  %s4 = inlined_call_operand.vmem [shape: f32[1,16], index: 4, kind: input, shape index: {}]
  %s5 = inlined_call_operand.hbm [shape: f32[2,16,16,16], index: 5, kind: output, shape index: {}]
  %s6 = sld [smem:[#allocation0]]
  $region53: #{tpu_custom_call.1} parent=0
    _
  %s8 = ssub.s32 1, %s6
  %s9 = scalar_select 0, %s8, %s6
  $region1: #{tpu_custom_call.1} parent=0
    #allocation2 [shape = 'u8[131072]{0}', space=vmem, size = 0x20000, scoped, tag = 'output window, operand 0']
    #allocation3 [shape = 's32[2]{0}', space=sflag, size = 0x8, scoped, tag = 'scoped memory for tpu_custom_call.1']
    %10 = vsyncpa [#allocation3], 0
    %s11 = scalar_lea.sflag [#allocation3], 1
    %12 = vsyncpa %s11, 0
    loop: start=0, step=1, limit=6
    $region2: #{tpu_custom_call.1} parent=1 // loop_pre_header
      _
    $region3: #{tpu_custom_call.1} parent=1 // loop_header
      %s14 = sphi 0, %s18
      %p15 = scmp.ge.s32.totalorder %s14, 6
      %s21 = sphi 0, %s33
      %s22 = sphi 0, %s29
      %s23 = sphi 0, %s21
      %s24 = sphi 0, %s22
      %s25 = sphi 0, %s23
      %s26 = sphi 0, %s24
      %s38 = sphi 0, %s40
      %s41 = sphi 0, %s38
      %s42 = sphi 0, %s41
      %s58 = sphi 0, %s42
      %s62 = sphi 0, %s62
      %s64 = sphi 0, %s62
      %s65 = sphi 0, %s64
      %s79 = sphi 0, %s65
      %s83 = sphi 0, %s83
      %s85 = sphi 0, %s83
      %s86 = sphi 0, %s85
      %s100 = sphi 0, %s86
      %s104 = sphi 0, %s104
      %s106 = sphi 0, %s104
      %s107 = sphi 0, %s106
      %s121 = sphi 0, %s107
      %s125 = sphi 0, %s125
      %s127 = sphi 0, %s125
      %s128 = sphi 0, %s127
      %s142 = sphi 0, %s128
      %s150 = sphi 0, %s152
      %s153 = sphi 0, %s150
      %s154 = sphi 0, %s153
      %s170 = sphi 0, %s154
    $region4: #{tpu_custom_call.1} parent=1 // loop_header_branch
      %17 = sbr.rel (%p15) target = $region8
    $region5: #{tpu_custom_call.1} parent=1 // loop_body
      %s19 = ssub.s32 %s14, 1
      %s20 = ssub.s32 %s14, 2
      %s27 = sadd.s32 1, %s22
      %p28 = scmp.ge.s32.totalorder %s27, 2
      %s29 = scalar_select %p28, 0, %s27
      %s30 = sadd.s32 1, %s21
      %s31 = scalar_select %p28, %s30, %s21
      %p32 = scmp.ge.s32.totalorder %s31, 2
      %s33 = scalar_select %p32, 0, %s31
      %s34 = ssub.s32 %s21, %s33
      %s35 = ssub.s32 %s22, %s29
      %s36 = sor.u32 %s34, %s35
      %p37 = scmp.eq.s32.totalorder %s36, 0
      %s39 = sadd.s32 %s38, 1
      %s40 = scalar_select %p37, %s38, %s39
      %p43 = pneg %p37
      %p44 = scmp.eq.s32.totalorder %s14, 3
      %p45 = por %p43, %p44
      %p46 = scmp.ne.s32.totalorder %s38, %s41
      %p47 = scmp.eq.s32.totalorder %s14, 0
      %p48 = por %p46, %p47
      %p49 = scmp.ne.s32.totalorder %s38, %s41
      %p50 = scmp.eq.s32.totalorder %s19, 3
      %p51 = por %p49, %p50
      %p52 = scmp.ne.s32.totalorder %s41, %s42
      %p53 = scmp.eq.s32.totalorder %s19, 0
      %p54 = por %p52, %p53
      %p55 = scmp.ne.s32.totalorder %s41, %s42
      %p56 = scmp.eq.s32.totalorder %s20, 3
      %p57 = por %p55, %p56
      %p59 = scmp.ne.s32.totalorder %s42, %s58
      %p60 = scmp.eq.s32.totalorder %s20, 0
      %p61 = por %p59, %p60
      %s63 = sadd.s32 %s62, 1
      %p66 = scmp.eq.s32.totalorder %s14, 3
      %p67 = scmp.ne.s32.totalorder %s62, %s64
      %p68 = scmp.eq.s32.totalorder %s14, 0
      %p69 = por %p67, %p68
      %p70 = scmp.ne.s32.totalorder %s62, %s64
      %p71 = scmp.eq.s32.totalorder %s19, 3
      %p72 = por %p70, %p71
      %p73 = scmp.ne.s32.totalorder %s64, %s65
      %p74 = scmp.eq.s32.totalorder %s19, 0
      %p75 = por %p73, %p74
      %p76 = scmp.ne.s32.totalorder %s64, %s65
      %p77 = scmp.eq.s32.totalorder %s20, 3
      %p78 = por %p76, %p77
      %p80 = scmp.ne.s32.totalorder %s65, %s79
      %p81 = scmp.eq.s32.totalorder %s20, 0
      %p82 = por %p80, %p81
      %s84 = sadd.s32 %s83, 1
      %p87 = scmp.eq.s32.totalorder %s14, 3
      %p88 = scmp.ne.s32.totalorder %s83, %s85
      %p89 = scmp.eq.s32.totalorder %s14, 0
      %p90 = por %p88, %p89
      %p91 = scmp.ne.s32.totalorder %s83, %s85
      %p92 = scmp.eq.s32.totalorder %s19, 3
      %p93 = por %p91, %p92
      %p94 = scmp.ne.s32.totalorder %s85, %s86
      %p95 = scmp.eq.s32.totalorder %s19, 0
      %p96 = por %p94, %p95
      %p97 = scmp.ne.s32.totalorder %s85, %s86
      %p98 = scmp.eq.s32.totalorder %s20, 3
      %p99 = por %p97, %p98
      %p101 = scmp.ne.s32.totalorder %s86, %s100
      %p102 = scmp.eq.s32.totalorder %s20, 0
      %p103 = por %p101, %p102
      %s105 = sadd.s32 %s104, 1
      %p108 = scmp.eq.s32.totalorder %s14, 3
      %p109 = scmp.ne.s32.totalorder %s104, %s106
      %p110 = scmp.eq.s32.totalorder %s14, 0
      %p111 = por %p109, %p110
      %p112 = scmp.ne.s32.totalorder %s104, %s106
      %p113 = scmp.eq.s32.totalorder %s19, 3
      %p114 = por %p112, %p113
      %p115 = scmp.ne.s32.totalorder %s106, %s107
      %p116 = scmp.eq.s32.totalorder %s19, 0
      %p117 = por %p115, %p116
      %p118 = scmp.ne.s32.totalorder %s106, %s107
      %p119 = scmp.eq.s32.totalorder %s20, 3
      %p120 = por %p118, %p119
      %p122 = scmp.ne.s32.totalorder %s107, %s121
      %p123 = scmp.eq.s32.totalorder %s20, 0
      %p124 = por %p122, %p123
      %s126 = sadd.s32 %s125, 1
      %p129 = scmp.eq.s32.totalorder %s14, 3
      %p130 = scmp.ne.s32.totalorder %s125, %s127
      %p131 = scmp.eq.s32.totalorder %s14, 0
      %p132 = por %p130, %p131
      %p133 = scmp.ne.s32.totalorder %s125, %s127
      %p134 = scmp.eq.s32.totalorder %s19, 3
      %p135 = por %p133, %p134
      %p136 = scmp.ne.s32.totalorder %s127, %s128
      %p137 = scmp.eq.s32.totalorder %s19, 0
      %p138 = por %p136, %p137
      %p139 = scmp.ne.s32.totalorder %s127, %s128
      %p140 = scmp.eq.s32.totalorder %s20, 3
      %p141 = por %p139, %p140
      %p143 = scmp.ne.s32.totalorder %s128, %s142
      %p144 = scmp.eq.s32.totalorder %s20, 0
      %p145 = por %p143, %p144
      %s146 = ssub.s32 %s21, %s33
      %s147 = ssub.s32 %s22, %s29
      %s148 = sor.u32 %s146, %s147
      %p149 = scmp.eq.s32.totalorder %s148, 0
      %s151 = sadd.s32 %s150, 1
      %s152 = scalar_select %p149, %s150, %s151
      %p155 = pneg %p149
      %p156 = scmp.eq.s32.totalorder %s14, 3
      %p157 = por %p155, %p156
      %p158 = scmp.ne.s32.totalorder %s150, %s153
      %p159 = scmp.eq.s32.totalorder %s14, 0
      %p160 = por %p158, %p159
      %p161 = scmp.ne.s32.totalorder %s150, %s153
      %p162 = scmp.eq.s32.totalorder %s19, 3
      %p163 = por %p161, %p162
      %p164 = scmp.ne.s32.totalorder %s153, %s154
      %p165 = scmp.eq.s32.totalorder %s19, 0
      %p166 = por %p164, %p165
      %p167 = scmp.ne.s32.totalorder %s153, %s154
      %p168 = scmp.eq.s32.totalorder %s20, 3
      %p169 = por %p167, %p168
      %p171 = scmp.ne.s32.totalorder %s154, %s170
      %p172 = scmp.eq.s32.totalorder %s20, 0
      %p173 = por %p171, %p172
      %p174 = scmp.le.s32.totalorder 1, %s14
      %p175 = scmp.lt.s32.totalorder %s14, 5
      %p176 = pnand %p174, %p175
      %p177 = pneg %p176
      // Predicated region
      $region9: #{tpu_custom_call.1} parent=5 // pred_check
        _
      $region10: #{tpu_custom_call.1} parent=5 // pred_check_branch
        %179 = sbr.rel (%p176) target = $region12
      $region11: #{tpu_custom_call.1} parent=5 // pred_region
        %s180 = ssub.s32 %s14, 1
        // Predicated region
        $region13: #{tpu_custom_call.1} parent=11 // pred_check
          %p181 = pneg %p75
        $region14: #{tpu_custom_call.1} parent=11 // pred_check_branch
          %183 = sbr.rel (%p181) target = $region16
        $region15: #{tpu_custom_call.1} parent=11 // pred_region
          _
        $region16: #{tpu_custom_call.1} parent=11 // pred_fallthru
          _
        // Predicated region
        $region17: #{tpu_custom_call.1} parent=11 // pred_check
          %p184 = pneg %p96
        $region18: #{tpu_custom_call.1} parent=11 // pred_check_branch
          %186 = sbr.rel (%p184) target = $region20
        $region19: #{tpu_custom_call.1} parent=11 // pred_region
          _
        $region20: #{tpu_custom_call.1} parent=11 // pred_fallthru
          _
        // Predicated region
        $region21: #{tpu_custom_call.1} parent=11 // pred_check
          %p187 = pneg %p117
        $region22: #{tpu_custom_call.1} parent=11 // pred_check_branch
          %189 = sbr.rel (%p187) target = $region24
        $region23: #{tpu_custom_call.1} parent=11 // pred_region
          _
        $region24: #{tpu_custom_call.1} parent=11 // pred_fallthru
          _
        // Predicated region
        $region25: #{tpu_custom_call.1} parent=11 // pred_check
          %p190 = pneg %p138
        $region26: #{tpu_custom_call.1} parent=11 // pred_check_branch
          %192 = sbr.rel (%p190) target = $region28
        $region27: #{tpu_custom_call.1} parent=11 // pred_region
          _
        $region28: #{tpu_custom_call.1} parent=11 // pred_fallthru
          _
      $region12: #{tpu_custom_call.1} parent=5 // pred_fallthru
        _
      %p193 = scmp.lt.s32.totalorder %s14, 4
      // Predicated region
      $region29: #{tpu_custom_call.1} parent=5 // pred_check
        %p194 = pneg %p193
      $region30: #{tpu_custom_call.1} parent=5 // pred_check_branch
        %196 = sbr.rel (%p194) target = $region32
      $region31: #{tpu_custom_call.1} parent=5 // pred_region
        // Predicated region
        $region33: #{tpu_custom_call.1} parent=31 // pred_check
          %p197 = pneg %p48
        $region34: #{tpu_custom_call.1} parent=31 // pred_check_branch
          %199 = sbr.rel (%p197) target = $region36
        $region35: #{tpu_custom_call.1} parent=31 // pred_region
          %p200 = scmp.lt.s32.totalorder %s21, 1
          %s201 = scalar_select %p200, %s21, 1
          %p202 = scmp.lt.s32.totalorder %s22, 1
          %s203 = scalar_select %p202, %s22, 1
          %s204 = smul.addr %s203, 36
          %s205 = smul.addr %s201, 72
          %s206 = sadd.s32 %s204, %s205
          %s207 = smul.addr %s206, 8
          %s208 = scalar_lea.vmem %s0, %s207
        $region36: #{tpu_custom_call.1} parent=31 // pred_fallthru
          _
      $region32: #{tpu_custom_call.1} parent=5 // pred_fallthru
        _
      %p209 = scmp.le.s32.totalorder 1, %s14
      %p210 = scmp.lt.s32.totalorder %s14, 5
      %p211 = pnand %p209, %p210
      %p212 = pneg %p211
      // Predicated region
      $region37: #{tpu_custom_call.1} parent=5 // pred_check
        _
      $region38: #{tpu_custom_call.1} parent=5 // pred_check_branch
        %214 = sbr.rel (%p211) target = $region40
      $region39: #{tpu_custom_call.1} parent=5 // pred_region
        %s215 = ssub.s32 %s14, 1
        %p216 = scmp.lt.s32.totalorder %s23, 1
        %s217 = scalar_select %p216, %s23, 1
        %p218 = scmp.lt.s32.totalorder %s24, 1
        %s219 = scalar_select %p218, %s24, 1
        %s220 = smul.addr %s219, 36
        %s221 = smul.addr %s217, 72
        %s222 = sadd.s32 %s220, %s221
        %s223 = smul.addr %s222, 8
        %s224 = scalar_lea.vmem %s0, %s223
        %p225 = pneg %p54
        %p226 = pneg %p51
        %p227 = pneg %p75
        %p228 = pneg %p72
        %p229 = pneg %p96
        %p230 = pneg %p93
        %p231 = pneg %p117
        %p232 = pneg %p114
        %p233 = pneg %p138
        %p234 = pneg %p135
        %p235 = pneg %p166
        %p236 = pneg %p163
        %s237 = sand.u32 %s153, 1
        %s238 = scalar_lea.sflag [#allocation3], %s237
        %s239 = sand.u32 %s153, 1
        %s240 = smul.addr %s239, 128
        %s241 = scalar_lea.vmem [#allocation2], %s240
        %p242 = scmp.lt.s32.totalorder %s23, 1
        %s243 = scalar_select %p242, %s23, 1
        %p244 = scmp.lt.s32.totalorder %s24, 1
        %s245 = scalar_select %p244, %s24, 1
        %s246 = smul.addr %s245, 36
        %s247 = smul.addr %s243, 72
        %s248 = sadd.s32 %s246, %s247
        %s249 = smul.addr %s248, 8
        %s250 = scalar_lea.vmem %s0, %s249
        %s251 = smul.u32 8, %s24
        %v253 = vld [vmem:[%s250] sm:$0xff]
        %v254 = vld [vmem:[%s250 + $0x8] sm:$0xff]
        %v255 = vld [vmem:[%s250 + $0x10] sm:$0x3]
        %v256 = vld [vmem:[%s250 + $0x18] sm:$0xff]
        %v257 = vld [vmem:[%s250 + $0x20] sm:$0xff]
        %v258 = vld [vmem:[%s250 + $0x28] sm:$0x3]
        %v259 = vld [vmem:[%s250 + $0x30] sm:$0xff]
        %v260 = vld [vmem:[%s250 + $0x38] sm:$0xff]
        %v261 = vld [vmem:[%s250 + $0x40] sm:$0x3]
        %v262 = vld [vmem:[%s250 + $0x48] sm:$0xff]
        %v263 = vld [vmem:[%s250 + $0x50] sm:$0xff]
        %v264 = vld [vmem:[%s250 + $0x58] sm:$0x3]
        %v265 = vld [vmem:[%s250 + $0x60] sm:$0xff]
        %v266 = vld [vmem:[%s250 + $0x68] sm:$0xff]
        %v267 = vld [vmem:[%s250 + $0x70] sm:$0x3]
        %v268 = vld [vmem:[%s250 + $0x78] sm:$0xff]
        %v269 = vld [vmem:[%s250 + $0x80] sm:$0xff]
        %v270 = vld [vmem:[%s250 + $0x88] sm:$0x3]
        %v271 = vld [vmem:[%s250 + $0x90] sm:$0xff]
        %v272 = vld [vmem:[%s250 + $0x98] sm:$0xff]
        %v273 = vld [vmem:[%s250 + $0xa0] sm:$0x3]
        %v274 = vld [vmem:[%s250 + $0xa8] sm:$0xff]
        %v275 = vld [vmem:[%s250 + $0xb0] sm:$0xff]
        %v276 = vld [vmem:[%s250 + $0xb8] sm:$0x3]
        %v277 = vld [vmem:[%s250 + $0xc0] sm:$0xff]
        %v278 = vld [vmem:[%s250 + $0xc8] sm:$0xff]
        %v279 = vld [vmem:[%s250 + $0xd0] sm:$0x3]
        %v280 = vld [vmem:[%s250 + $0xd8] sm:$0xff]
        %v281 = vld [vmem:[%s250 + $0xe0] sm:$0xff]
        %v282 = vld [vmem:[%s250 + $0xe8] sm:$0x3]
        %v283 = vld [vmem:[%s250 + $0xf0] sm:$0xff]
        %v284 = vld [vmem:[%s250 + $0xf8] sm:$0xff]
        %v285 = vld [vmem:[%s250 + $0x100] sm:$0x3]
        %v286 = vld [vmem:[%s250 + $0x108] sm:$0xff]
        %v287 = vld [vmem:[%s250 + $0x110] sm:$0xff]
        %v288 = vld [vmem:[%s250 + $0x118] sm:$0x3]
        %vm319 = vcmask 1046528
        %v320 = vrot.slane %v253, 1
        %v321 = vrot.slane %v254, 1
        %v322 = vsel %vm319, %v320, %v321
        %v323 = vrot.slane %v255, 1
        %v324 = vsel %vm319, %v321, %v323
        %v325 = vrot.slane %v256, 1
        %v326 = vrot.slane %v257, 1
        %v327 = vsel %vm319, %v325, %v326
        %v328 = vrot.slane %v258, 1
        %v329 = vsel %vm319, %v326, %v328
        %v330 = vrot.slane %v259, 1
        %v331 = vrot.slane %v260, 1
        %v332 = vsel %vm319, %v330, %v331
        %v333 = vrot.slane %v261, 1
        %v334 = vsel %vm319, %v331, %v333
        %v335 = vrot.slane %v262, 1
        %v336 = vrot.slane %v263, 1
        %v337 = vsel %vm319, %v335, %v336
        %v338 = vrot.slane %v264, 1
        %v339 = vsel %vm319, %v336, %v338
        %v340 = vrot.slane %v265, 1
        %v341 = vrot.slane %v266, 1
        %v342 = vsel %vm319, %v340, %v341
        %v343 = vrot.slane %v267, 1
        %v344 = vsel %vm319, %v341, %v343
        %v345 = vrot.slane %v268, 1
        %v346 = vrot.slane %v269, 1
        %v347 = vsel %vm319, %v345, %v346
        %v348 = vrot.slane %v270, 1
        %v349 = vsel %vm319, %v346, %v348
        %v350 = vrot.slane %v271, 1
        %v351 = vrot.slane %v272, 1
        %v352 = vsel %vm319, %v350, %v351
        %v353 = vrot.slane %v273, 1
        %v354 = vsel %vm319, %v351, %v353
        %v355 = vrot.slane %v274, 1
        %v356 = vrot.slane %v275, 1
        %v357 = vsel %vm319, %v355, %v356
        %v358 = vrot.slane %v276, 1
        %v359 = vsel %vm319, %v356, %v358
        %v360 = vrot.slane %v277, 1
        %v361 = vrot.slane %v278, 1
        %v362 = vsel %vm319, %v360, %v361
        %v363 = vrot.slane %v279, 1
        %v364 = vsel %vm319, %v361, %v363
        %v365 = vrot.slane %v280, 1
        %v366 = vrot.slane %v281, 1
        %v367 = vsel %vm319, %v365, %v366
        %v368 = vrot.slane %v282, 1
        %v369 = vsel %vm319, %v366, %v368
        %vm370 = vcmask 1045504
        %v371 = vrot.slane %v253, 2
        %v372 = vrot.slane %v254, 2
        %v373 = vsel %vm370, %v371, %v372
        %v374 = vrot.slane %v255, 2
        %v375 = vsel %vm370, %v372, %v374
        %v376 = vrot.slane %v256, 2
        %v377 = vrot.slane %v257, 2
        %v378 = vsel %vm370, %v376, %v377
        %v379 = vrot.slane %v258, 2
        %v380 = vsel %vm370, %v377, %v379
        %v381 = vrot.slane %v259, 2
        %v382 = vrot.slane %v260, 2
        %v383 = vsel %vm370, %v381, %v382
        %v384 = vrot.slane %v261, 2
        %v385 = vsel %vm370, %v382, %v384
        %v386 = vrot.slane %v262, 2
        %v387 = vrot.slane %v263, 2
        %v388 = vsel %vm370, %v386, %v387
        %v389 = vrot.slane %v264, 2
        %v390 = vsel %vm370, %v387, %v389
        %v391 = vrot.slane %v265, 2
        %v392 = vrot.slane %v266, 2
        %v393 = vsel %vm370, %v391, %v392
        %v394 = vrot.slane %v267, 2
        %v395 = vsel %vm370, %v392, %v394
        %v396 = vrot.slane %v268, 2
        %v397 = vrot.slane %v269, 2
        %v398 = vsel %vm370, %v396, %v397
        %v399 = vrot.slane %v270, 2
        %v400 = vsel %vm370, %v397, %v399
        %v401 = vrot.slane %v271, 2
        %v402 = vrot.slane %v272, 2
        %v403 = vsel %vm370, %v401, %v402
        %v404 = vrot.slane %v273, 2
        %v405 = vsel %vm370, %v402, %v404
        %v406 = vrot.slane %v274, 2
        %v407 = vrot.slane %v275, 2
        %v408 = vsel %vm370, %v406, %v407
        %v409 = vrot.slane %v276, 2
        %v410 = vsel %vm370, %v407, %v409
        %v411 = vrot.slane %v277, 2
        %v412 = vrot.slane %v278, 2
        %v413 = vsel %vm370, %v411, %v412
        %v414 = vrot.slane %v279, 2
        %v415 = vsel %vm370, %v412, %v414
        %v416 = vrot.slane %v280, 2
        %v417 = vrot.slane %v281, 2
        %v418 = vsel %vm370, %v416, %v417
        %v419 = vrot.slane %v282, 2
        %v420 = vsel %vm370, %v417, %v419
        %v424 = vrot.slane %v283, 1
        %v425 = vrot.slane %v284, 1
        %v426 = vsel %vm319, %v424, %v425
        %v427 = vrot.slane %v285, 1
        %v428 = vsel %vm319, %v425, %v427
        %v429 = vrot.slane %v283, 2
        %v430 = vrot.slane %v284, 2
        %v431 = vsel %vm370, %v429, %v430
        %v432 = vrot.slane %v285, 2
        %v433 = vsel %vm370, %v430, %v432
        %v437 = vrot.slane %v286, 1
        %v438 = vrot.slane %v287, 1
        %v439 = vsel %vm319, %v437, %v438
        %v440 = vrot.slane %v288, 1
        %v441 = vsel %vm319, %v438, %v440
        %v442 = vrot.slane %v286, 2
        %v443 = vrot.slane %v287, 2
        %v444 = vsel %vm370, %v442, %v443
        %v445 = vrot.slane %v288, 2
        %v446 = vsel %vm370, %v443, %v445
        %467 = vrot.lane.b32.xlu0 %v322, 16
        %v468 = vpop.permute.xlu0 %467
        %469 = vrot.lane.b32.xlu0 %v324, 16
        %v470 = vpop.permute.xlu0 %469
        %471 = vrot.lane.b32.xlu0 %v327, 16
        %v472 = vpop.permute.xlu0 %471
        %473 = vrot.lane.b32.xlu0 %v329, 16
        %v474 = vpop.permute.xlu0 %473
        %475 = vrot.lane.b32.xlu0 %v332, 16
        %v476 = vpop.permute.xlu0 %475
        %477 = vrot.lane.b32.xlu0 %v334, 16
        %v478 = vpop.permute.xlu0 %477
        %479 = vrot.lane.b32.xlu0 %v337, 16
        %v480 = vpop.permute.xlu0 %479
        %481 = vrot.lane.b32.xlu0 %v339, 16
        %v482 = vpop.permute.xlu0 %481
        %483 = vrot.lane.b32.xlu0 %v342, 16
        %v484 = vpop.permute.xlu0 %483
        %485 = vrot.lane.b32.xlu0 %v344, 16
        %v486 = vpop.permute.xlu0 %485
        %487 = vrot.lane.b32.xlu0 %v347, 16
        %v488 = vpop.permute.xlu0 %487
        %489 = vrot.lane.b32.xlu0 %v349, 16
        %v490 = vpop.permute.xlu0 %489
        %491 = vrot.lane.b32.xlu0 %v352, 16
        %v492 = vpop.permute.xlu0 %491
        %493 = vrot.lane.b32.xlu0 %v354, 16
        %v494 = vpop.permute.xlu0 %493
        %495 = vrot.lane.b32.xlu0 %v357, 16
        %v496 = vpop.permute.xlu0 %495
        %497 = vrot.lane.b32.xlu0 %v359, 16
        %v498 = vpop.permute.xlu0 %497
        %499 = vrot.lane.b32.xlu0 %v362, 16
        %v500 = vpop.permute.xlu0 %499
        %501 = vrot.lane.b32.xlu0 %v364, 16
        %v502 = vpop.permute.xlu0 %501
        %503 = vrot.lane.b32.xlu0 %v367, 16
        %v504 = vpop.permute.xlu0 %503
        %505 = vrot.lane.b32.xlu0 %v369, 16
        %v506 = vpop.permute.xlu0 %505
        %527 = vrot.lane.b32.xlu0 %v373, 32
        %v528 = vpop.permute.xlu0 %527
        %529 = vrot.lane.b32.xlu0 %v375, 32
        %v530 = vpop.permute.xlu0 %529
        %531 = vrot.lane.b32.xlu0 %v378, 32
        %v532 = vpop.permute.xlu0 %531
        %533 = vrot.lane.b32.xlu0 %v380, 32
        %v534 = vpop.permute.xlu0 %533
        %535 = vrot.lane.b32.xlu0 %v383, 32
        %v536 = vpop.permute.xlu0 %535
        %537 = vrot.lane.b32.xlu0 %v385, 32
        %v538 = vpop.permute.xlu0 %537
        %539 = vrot.lane.b32.xlu0 %v388, 32
        %v540 = vpop.permute.xlu0 %539
        %541 = vrot.lane.b32.xlu0 %v390, 32
        %v542 = vpop.permute.xlu0 %541
        %543 = vrot.lane.b32.xlu0 %v393, 32
        %v544 = vpop.permute.xlu0 %543
        %545 = vrot.lane.b32.xlu0 %v395, 32
        %v546 = vpop.permute.xlu0 %545
        %547 = vrot.lane.b32.xlu0 %v398, 32
        %v548 = vpop.permute.xlu0 %547
        %549 = vrot.lane.b32.xlu0 %v400, 32
        %v550 = vpop.permute.xlu0 %549
        %551 = vrot.lane.b32.xlu0 %v403, 32
        %v552 = vpop.permute.xlu0 %551
        %553 = vrot.lane.b32.xlu0 %v405, 32
        %v554 = vpop.permute.xlu0 %553
        %555 = vrot.lane.b32.xlu0 %v408, 32
        %v556 = vpop.permute.xlu0 %555
        %557 = vrot.lane.b32.xlu0 %v410, 32
        %v558 = vpop.permute.xlu0 %557
        %559 = vrot.lane.b32.xlu0 %v413, 32
        %v560 = vpop.permute.xlu0 %559
        %561 = vrot.lane.b32.xlu0 %v415, 32
        %v562 = vpop.permute.xlu0 %561
        %563 = vrot.lane.b32.xlu0 %v418, 32
        %v564 = vpop.permute.xlu0 %563
        %565 = vrot.lane.b32.xlu0 %v420, 32
        %v566 = vpop.permute.xlu0 %565
        %587 = vrot.lane.b32.xlu0 %v256, 48
        %v588 = vpop.permute.xlu0 %587
        %589 = vrot.lane.b32.xlu0 %v257, 48
        %v590 = vpop.permute.xlu0 %589
        %591 = vrot.lane.b32.xlu0 %v259, 48
        %v592 = vpop.permute.xlu0 %591
        %593 = vrot.lane.b32.xlu0 %v260, 48
        %v594 = vpop.permute.xlu0 %593
        %595 = vrot.lane.b32.xlu0 %v262, 48
        %v596 = vpop.permute.xlu0 %595
        %597 = vrot.lane.b32.xlu0 %v263, 48
        %v598 = vpop.permute.xlu0 %597
        %599 = vrot.lane.b32.xlu0 %v265, 48
        %v600 = vpop.permute.xlu0 %599
        %601 = vrot.lane.b32.xlu0 %v266, 48
        %v602 = vpop.permute.xlu0 %601
        %603 = vrot.lane.b32.xlu0 %v268, 48
        %v604 = vpop.permute.xlu0 %603
        %605 = vrot.lane.b32.xlu0 %v269, 48
        %v606 = vpop.permute.xlu0 %605
        %607 = vrot.lane.b32.xlu0 %v271, 48
        %v608 = vpop.permute.xlu0 %607
        %609 = vrot.lane.b32.xlu0 %v272, 48
        %v610 = vpop.permute.xlu0 %609
        %611 = vrot.lane.b32.xlu0 %v274, 48
        %v612 = vpop.permute.xlu0 %611
        %613 = vrot.lane.b32.xlu0 %v275, 48
        %v614 = vpop.permute.xlu0 %613
        %615 = vrot.lane.b32.xlu0 %v277, 48
        %v616 = vpop.permute.xlu0 %615
        %617 = vrot.lane.b32.xlu0 %v278, 48
        %v618 = vpop.permute.xlu0 %617
        %619 = vrot.lane.b32.xlu0 %v280, 48
        %v620 = vpop.permute.xlu0 %619
        %621 = vrot.lane.b32.xlu0 %v281, 48
        %v622 = vpop.permute.xlu0 %621
        %623 = vrot.lane.b32.xlu0 %v283, 48
        %v624 = vpop.permute.xlu0 %623
        %625 = vrot.lane.b32.xlu0 %v284, 48
        %v626 = vpop.permute.xlu0 %625
        %647 = vrot.lane.b32.xlu0 %v327, 64
        %v648 = vpop.permute.xlu0 %647
        %649 = vrot.lane.b32.xlu0 %v329, 64
        %v650 = vpop.permute.xlu0 %649
        %651 = vrot.lane.b32.xlu0 %v332, 64
        %v652 = vpop.permute.xlu0 %651
        %653 = vrot.lane.b32.xlu0 %v334, 64
        %v654 = vpop.permute.xlu0 %653
        %655 = vrot.lane.b32.xlu0 %v337, 64
        %v656 = vpop.permute.xlu0 %655
        %657 = vrot.lane.b32.xlu0 %v339, 64
        %v658 = vpop.permute.xlu0 %657
        %659 = vrot.lane.b32.xlu0 %v342, 64
        %v660 = vpop.permute.xlu0 %659
        %661 = vrot.lane.b32.xlu0 %v344, 64
        %v662 = vpop.permute.xlu0 %661
        %663 = vrot.lane.b32.xlu0 %v347, 64
        %v664 = vpop.permute.xlu0 %663
        %665 = vrot.lane.b32.xlu0 %v349, 64
        %v666 = vpop.permute.xlu0 %665
        %667 = vrot.lane.b32.xlu0 %v352, 64
        %v668 = vpop.permute.xlu0 %667
        %669 = vrot.lane.b32.xlu0 %v354, 64
        %v670 = vpop.permute.xlu0 %669
        %671 = vrot.lane.b32.xlu0 %v357, 64
        %v672 = vpop.permute.xlu0 %671
        %673 = vrot.lane.b32.xlu0 %v359, 64
        %v674 = vpop.permute.xlu0 %673
        %675 = vrot.lane.b32.xlu0 %v362, 64
        %v676 = vpop.permute.xlu0 %675
        %677 = vrot.lane.b32.xlu0 %v364, 64
        %v678 = vpop.permute.xlu0 %677
        %679 = vrot.lane.b32.xlu0 %v367, 64
        %v680 = vpop.permute.xlu0 %679
        %681 = vrot.lane.b32.xlu0 %v369, 64
        %v682 = vpop.permute.xlu0 %681
        %683 = vrot.lane.b32.xlu0 %v426, 64
        %v684 = vpop.permute.xlu0 %683
        %685 = vrot.lane.b32.xlu0 %v428, 64
        %v686 = vpop.permute.xlu0 %685
        %707 = vrot.lane.b32.xlu0 %v378, 80
        %v708 = vpop.permute.xlu0 %707
        %709 = vrot.lane.b32.xlu0 %v380, 80
        %v710 = vpop.permute.xlu0 %709
        %711 = vrot.lane.b32.xlu0 %v383, 80
        %v712 = vpop.permute.xlu0 %711
        %713 = vrot.lane.b32.xlu0 %v385, 80
        %v714 = vpop.permute.xlu0 %713
        %715 = vrot.lane.b32.xlu0 %v388, 80
        %v716 = vpop.permute.xlu0 %715
        %717 = vrot.lane.b32.xlu0 %v390, 80
        %v718 = vpop.permute.xlu0 %717
        %719 = vrot.lane.b32.xlu0 %v393, 80
        %v720 = vpop.permute.xlu0 %719
        %721 = vrot.lane.b32.xlu0 %v395, 80
        %v722 = vpop.permute.xlu0 %721
        %723 = vrot.lane.b32.xlu0 %v398, 80
        %v724 = vpop.permute.xlu0 %723
        %725 = vrot.lane.b32.xlu0 %v400, 80
        %v726 = vpop.permute.xlu0 %725
        %727 = vrot.lane.b32.xlu0 %v403, 80
        %v728 = vpop.permute.xlu0 %727
        %729 = vrot.lane.b32.xlu0 %v405, 80
        %v730 = vpop.permute.xlu0 %729
        %731 = vrot.lane.b32.xlu0 %v408, 80
        %v732 = vpop.permute.xlu0 %731
        %733 = vrot.lane.b32.xlu0 %v410, 80
        %v734 = vpop.permute.xlu0 %733
        %735 = vrot.lane.b32.xlu0 %v413, 80
        %v736 = vpop.permute.xlu0 %735
        %737 = vrot.lane.b32.xlu0 %v415, 80
        %v738 = vpop.permute.xlu0 %737
        %739 = vrot.lane.b32.xlu0 %v418, 80
        %v740 = vpop.permute.xlu0 %739
        %741 = vrot.lane.b32.xlu0 %v420, 80
        %v742 = vpop.permute.xlu0 %741
        %743 = vrot.lane.b32.xlu0 %v431, 80
        %v744 = vpop.permute.xlu0 %743
        %745 = vrot.lane.b32.xlu0 %v433, 80
        %v746 = vpop.permute.xlu0 %745
        %767 = vrot.lane.b32.xlu0 %v259, 96
        %v768 = vpop.permute.xlu0 %767
        %769 = vrot.lane.b32.xlu0 %v260, 96
        %v770 = vpop.permute.xlu0 %769
        %771 = vrot.lane.b32.xlu0 %v262, 96
        %v772 = vpop.permute.xlu0 %771
        %773 = vrot.lane.b32.xlu0 %v263, 96
        %v774 = vpop.permute.xlu0 %773
        %775 = vrot.lane.b32.xlu0 %v265, 96
        %v776 = vpop.permute.xlu0 %775
        %777 = vrot.lane.b32.xlu0 %v266, 96
        %v778 = vpop.permute.xlu0 %777
        %779 = vrot.lane.b32.xlu0 %v268, 96
        %v780 = vpop.permute.xlu0 %779
        %781 = vrot.lane.b32.xlu0 %v269, 96
        %v782 = vpop.permute.xlu0 %781
        %783 = vrot.lane.b32.xlu0 %v271, 96
        %v784 = vpop.permute.xlu0 %783
        %785 = vrot.lane.b32.xlu0 %v272, 96
        %v786 = vpop.permute.xlu0 %785
        %787 = vrot.lane.b32.xlu0 %v274, 96
        %v788 = vpop.permute.xlu0 %787
        %789 = vrot.lane.b32.xlu0 %v275, 96
        %v790 = vpop.permute.xlu0 %789
        %791 = vrot.lane.b32.xlu0 %v277, 96
        %v792 = vpop.permute.xlu0 %791
        %793 = vrot.lane.b32.xlu0 %v278, 96
        %v794 = vpop.permute.xlu0 %793
        %795 = vrot.lane.b32.xlu0 %v280, 96
        %v796 = vpop.permute.xlu0 %795
        %797 = vrot.lane.b32.xlu0 %v281, 96
        %v798 = vpop.permute.xlu0 %797
        %799 = vrot.lane.b32.xlu0 %v283, 96
        %v800 = vpop.permute.xlu0 %799
        %801 = vrot.lane.b32.xlu0 %v284, 96
        %v802 = vpop.permute.xlu0 %801
        %803 = vrot.lane.b32.xlu0 %v286, 96
        %v804 = vpop.permute.xlu0 %803
        %805 = vrot.lane.b32.xlu0 %v287, 96
        %v806 = vpop.permute.xlu0 %805
        %827 = vrot.lane.b32.xlu0 %v332, 112
        %v828 = vpop.permute.xlu0 %827
        %829 = vrot.lane.b32.xlu0 %v334, 112
        %v830 = vpop.permute.xlu0 %829
        %831 = vrot.lane.b32.xlu0 %v337, 112
        %v832 = vpop.permute.xlu0 %831
        %833 = vrot.lane.b32.xlu0 %v339, 112
        %v834 = vpop.permute.xlu0 %833
        %835 = vrot.lane.b32.xlu0 %v342, 112
        %v836 = vpop.permute.xlu0 %835
        %837 = vrot.lane.b32.xlu0 %v344, 112
        %v838 = vpop.permute.xlu0 %837
        %839 = vrot.lane.b32.xlu0 %v347, 112
        %v840 = vpop.permute.xlu0 %839
        %841 = vrot.lane.b32.xlu0 %v349, 112
        %v842 = vpop.permute.xlu0 %841
        %843 = vrot.lane.b32.xlu0 %v352, 112
        %v844 = vpop.permute.xlu0 %843
        %845 = vrot.lane.b32.xlu0 %v354, 112
        %v846 = vpop.permute.xlu0 %845
        %847 = vrot.lane.b32.xlu0 %v357, 112
        %v848 = vpop.permute.xlu0 %847
        %849 = vrot.lane.b32.xlu0 %v359, 112
        %v850 = vpop.permute.xlu0 %849
        %851 = vrot.lane.b32.xlu0 %v362, 112
        %v852 = vpop.permute.xlu0 %851
        %853 = vrot.lane.b32.xlu0 %v364, 112
        %v854 = vpop.permute.xlu0 %853
        %855 = vrot.lane.b32.xlu0 %v367, 112
        %v856 = vpop.permute.xlu0 %855
        %857 = vrot.lane.b32.xlu0 %v369, 112
        %v858 = vpop.permute.xlu0 %857
        %859 = vrot.lane.b32.xlu0 %v426, 112
        %v860 = vpop.permute.xlu0 %859
        %861 = vrot.lane.b32.xlu0 %v428, 112
        %v862 = vpop.permute.xlu0 %861
        %863 = vrot.lane.b32.xlu0 %v439, 112
        %v864 = vpop.permute.xlu0 %863
        %865 = vrot.lane.b32.xlu0 %v441, 112
        %v866 = vpop.permute.xlu0 %865
        %vm887 = vcmask 130048
        %v888 = vsel %vm887, %v253, %v468
        %v889 = vsel %vm887, %v254, %v470
        %v890 = vsel %vm887, %v256, %v472
        %v891 = vsel %vm887, %v257, %v474
        %v892 = vsel %vm887, %v259, %v476
        %v893 = vsel %vm887, %v260, %v478
        %v894 = vsel %vm887, %v262, %v480
        %v895 = vsel %vm887, %v263, %v482
        %v896 = vsel %vm887, %v265, %v484
        %v897 = vsel %vm887, %v266, %v486
        %v898 = vsel %vm887, %v268, %v488
        %v899 = vsel %vm887, %v269, %v490
        %v900 = vsel %vm887, %v271, %v492
        %v901 = vsel %vm887, %v272, %v494
        %v902 = vsel %vm887, %v274, %v496
        %v903 = vsel %vm887, %v275, %v498
        %v904 = vsel %vm887, %v277, %v500
        %v905 = vsel %vm887, %v278, %v502
        %v906 = vsel %vm887, %v280, %v504
        %v907 = vsel %vm887, %v281, %v506
        %vm908 = vcmask 261120
        %v909 = vsel %vm908, %v888, %v528
        %v910 = vsel %vm908, %v889, %v530
        %v911 = vsel %vm908, %v890, %v532
        %v912 = vsel %vm908, %v891, %v534
        %v913 = vsel %vm908, %v892, %v536
        %v914 = vsel %vm908, %v893, %v538
        %v915 = vsel %vm908, %v894, %v540
        %v916 = vsel %vm908, %v895, %v542
        %v917 = vsel %vm908, %v896, %v544
        %v918 = vsel %vm908, %v897, %v546
        %v919 = vsel %vm908, %v898, %v548
        %v920 = vsel %vm908, %v899, %v550
        %v921 = vsel %vm908, %v900, %v552
        %v922 = vsel %vm908, %v901, %v554
        %v923 = vsel %vm908, %v902, %v556
        %v924 = vsel %vm908, %v903, %v558
        %v925 = vsel %vm908, %v904, %v560
        %v926 = vsel %vm908, %v905, %v562
        %v927 = vsel %vm908, %v906, %v564
        %v928 = vsel %vm908, %v907, %v566
        %vm929 = vcmask 392192
        %v930 = vsel %vm929, %v909, %v588
        %v931 = vsel %vm929, %v910, %v590
        %v932 = vsel %vm929, %v911, %v592
        %v933 = vsel %vm929, %v912, %v594
        %v934 = vsel %vm929, %v913, %v596
        %v935 = vsel %vm929, %v914, %v598
        %v936 = vsel %vm929, %v915, %v600
        %v937 = vsel %vm929, %v916, %v602
        %v938 = vsel %vm929, %v917, %v604
        %v939 = vsel %vm929, %v918, %v606
        %v940 = vsel %vm929, %v919, %v608
        %v941 = vsel %vm929, %v920, %v610
        %v942 = vsel %vm929, %v921, %v612
        %v943 = vsel %vm929, %v922, %v614
        %v944 = vsel %vm929, %v923, %v616
        %v945 = vsel %vm929, %v924, %v618
        %v946 = vsel %vm929, %v925, %v620
        %v947 = vsel %vm929, %v926, %v622
        %v948 = vsel %vm929, %v927, %v624
        %v949 = vsel %vm929, %v928, %v626
        %vm950 = vcmask 523264
        %v951 = vsel %vm950, %v930, %v648
        %v952 = vsel %vm950, %v931, %v650
        %v953 = vsel %vm950, %v932, %v652
        %v954 = vsel %vm950, %v933, %v654
        %v955 = vsel %vm950, %v934, %v656
        %v956 = vsel %vm950, %v935, %v658
        %v957 = vsel %vm950, %v936, %v660
        %v958 = vsel %vm950, %v937, %v662
        %v959 = vsel %vm950, %v938, %v664
        %v960 = vsel %vm950, %v939, %v666
        %v961 = vsel %vm950, %v940, %v668
        %v962 = vsel %vm950, %v941, %v670
        %v963 = vsel %vm950, %v942, %v672
        %v964 = vsel %vm950, %v943, %v674
        %v965 = vsel %vm950, %v944, %v676
        %v966 = vsel %vm950, %v945, %v678
        %v967 = vsel %vm950, %v946, %v680
        %v968 = vsel %vm950, %v947, %v682
        %v969 = vsel %vm950, %v948, %v684
        %v970 = vsel %vm950, %v949, %v686
        %vm971 = vcmask 654336
        %v972 = vsel %vm971, %v951, %v708
        %v973 = vsel %vm971, %v952, %v710
        %v974 = vsel %vm971, %v953, %v712
        %v975 = vsel %vm971, %v954, %v714
        %v976 = vsel %vm971, %v955, %v716
        %v977 = vsel %vm971, %v956, %v718
        %v978 = vsel %vm971, %v957, %v720
        %v979 = vsel %vm971, %v958, %v722
        %v980 = vsel %vm971, %v959, %v724
        %v981 = vsel %vm971, %v960, %v726
        %v982 = vsel %vm971, %v961, %v728
        %v983 = vsel %vm971, %v962, %v730
        %v984 = vsel %vm971, %v963, %v732
        %v985 = vsel %vm971, %v964, %v734
        %v986 = vsel %vm971, %v965, %v736
        %v987 = vsel %vm971, %v966, %v738
        %v988 = vsel %vm971, %v967, %v740
        %v989 = vsel %vm971, %v968, %v742
        %v990 = vsel %vm971, %v969, %v744
        %v991 = vsel %vm971, %v970, %v746
        %vm992 = vcmask 785408
        %v993 = vsel %vm992, %v972, %v768
        %v994 = vsel %vm992, %v973, %v770
        %v995 = vsel %vm992, %v974, %v772
        %v996 = vsel %vm992, %v975, %v774
        %v997 = vsel %vm992, %v976, %v776
        %v998 = vsel %vm992, %v977, %v778
        %v999 = vsel %vm992, %v978, %v780
        %v1000 = vsel %vm992, %v979, %v782
        %v1001 = vsel %vm992, %v980, %v784
        %v1002 = vsel %vm992, %v981, %v786
        %v1003 = vsel %vm992, %v982, %v788
        %v1004 = vsel %vm992, %v983, %v790
        %v1005 = vsel %vm992, %v984, %v792
        %v1006 = vsel %vm992, %v985, %v794
        %v1007 = vsel %vm992, %v986, %v796
        %v1008 = vsel %vm992, %v987, %v798
        %v1009 = vsel %vm992, %v988, %v800
        %v1010 = vsel %vm992, %v989, %v802
        %v1011 = vsel %vm992, %v990, %v804
        %v1012 = vsel %vm992, %v991, %v806
        %vm1013 = vcmask 916480
        %v1014 = vsel %vm1013, %v993, %v828
        %v1015 = vsel %vm1013, %v994, %v830
        %v1016 = vsel %vm1013, %v995, %v832
        %v1017 = vsel %vm1013, %v996, %v834
        %v1018 = vsel %vm1013, %v997, %v836
        %v1019 = vsel %vm1013, %v998, %v838
        %v1020 = vsel %vm1013, %v999, %v840
        %v1021 = vsel %vm1013, %v1000, %v842
        %v1022 = vsel %vm1013, %v1001, %v844
        %v1023 = vsel %vm1013, %v1002, %v846
        %v1024 = vsel %vm1013, %v1003, %v848
        %v1025 = vsel %vm1013, %v1004, %v850
        %v1026 = vsel %vm1013, %v1005, %v852
        %v1027 = vsel %vm1013, %v1006, %v854
        %v1028 = vsel %vm1013, %v1007, %v856
        %v1029 = vsel %vm1013, %v1008, %v858
        %v1030 = vsel %vm1013, %v1009, %v860
        %v1031 = vsel %vm1013, %v1010, %v862
        %v1032 = vsel %vm1013, %v1011, %v864
        %v1033 = vsel %vm1013, %v1012, %v866
        %v1034 = vpack.c.bf16 %v1015, %v1014
        %v1035 = vpack.c.bf16 %v385, %v383
        %v1036 = vpack.c.bf16 %v1017, %v1016
        %v1037 = vpack.c.bf16 %v390, %v388
        %v1038 = vpack.c.bf16 %v1019, %v1018
        %v1039 = vpack.c.bf16 %v395, %v393
        %v1040 = vpack.c.bf16 %v1021, %v1020
        %v1041 = vpack.c.bf16 %v400, %v398
        %v1042 = vpack.c.bf16 %v1023, %v1022
        %v1043 = vpack.c.bf16 %v405, %v403
        %v1044 = vpack.c.bf16 %v1025, %v1024
        %v1045 = vpack.c.bf16 %v410, %v408
        %v1046 = vpack.c.bf16 %v1027, %v1026
        %v1047 = vpack.c.bf16 %v415, %v413
        %v1048 = vpack.c.bf16 %v1029, %v1028
        %v1049 = vpack.c.bf16 %v420, %v418
        %v1050 = vpack.c.bf16 %v1031, %v1030
        %v1051 = vpack.c.bf16 %v433, %v431
        %v1052 = vpack.c.bf16 %v1033, %v1032
        %v1053 = vpack.c.bf16 %v446, %v444
        %v1054 = vld [vmem:[%s1] sm:$0xf]
        %v1055 = vld [vmem:[%s1 + $0x4] sm:$0xf]
        %v1056 = vld [vmem:[%s1 + $0x8] sm:$0xf]
        %v1057 = vld [vmem:[%s1 + $0xc] sm:$0xf]
        %v1058 = vld [vmem:[%s1 + $0x10] sm:$0xf]
        %v1059 = vld [vmem:[%s1 + $0x14] sm:$0xf]
        %v1060 = vld [vmem:[%s1 + $0x18] sm:$0xf]
        %v1061 = vld [vmem:[%s1 + $0x1c] sm:$0xf]
        %v1062 = vld [vmem:[%s1 + $0x20] sm:$0xf]
        %v1063 = vld [vmem:[%s1 + $0x24] sm:$0xf]
        %v1064 = vld [vmem:[%s1 + $0x28] sm:$0xf]
        %v1065 = vld [vmem:[%s1 + $0x2c] sm:$0xf]
        %v1066 = vld [vmem:[%s1 + $0x30] sm:$0xf]
        %v1067 = vld [vmem:[%s1 + $0x34] sm:$0xf]
        %v1068 = vld [vmem:[%s1 + $0x38] sm:$0xf]
        %v1069 = vld [vmem:[%s1 + $0x3c] sm:$0xf]
        %v1070 = vld [vmem:[%s1 + $0x40] sm:$0xf]
        %v1071 = vld [vmem:[%s1 + $0x44] sm:$0xf]
        %v1072 = vld [vmem:[%s2] sm:$0x1]
        %v1074 = vperm.slane %v1072, 0
        %v1094 = vunpack.c.l.b16 %v1054
        %v1095 = vunpack.c.l.b16 %v1055
        %v1096 = vunpack.c.l.b16 %v1056
        %v1097 = vunpack.c.l.b16 %v1057
        %v1098 = vunpack.c.l.b16 %v1058
        %v1099 = vunpack.c.l.b16 %v1059
        %v1100 = vunpack.c.l.b16 %v1060
        %v1101 = vunpack.c.l.b16 %v1061
        %v1102 = vunpack.c.l.b16 %v1062
        %v1103 = vunpack.c.l.b16 %v1063
        %v1104 = vunpack.c.l.b16 %v1064
        %v1105 = vunpack.c.l.b16 %v1065
        %v1106 = vunpack.c.l.b16 %v1066
        %v1107 = vunpack.c.l.b16 %v1067
        %v1108 = vunpack.c.l.b16 %v1068
        %v1109 = vunpack.c.l.b16 %v1069
        %v1110 = vunpack.c.l.b16 %v1070
        %v1111 = vunpack.c.l.b16 %v1071
        %v1112 = vpack.c.b16 %v1095, %v1094
        %v1113 = vpack.c.b16 %v1097, %v1096
        %v1114 = vpack.c.b16 %v1099, %v1098
        %v1115 = vpack.c.b16 %v1101, %v1100
        %v1116 = vpack.c.b16 %v1103, %v1102
        %v1117 = vpack.c.b16 %v1105, %v1104
        %v1118 = vpack.c.b16 %v1107, %v1106
        %v1119 = vpack.c.b16 %v1109, %v1108
        %v1120 = vpack.c.b16 %v1111, %v1110
        %v1131 = vsel %vm887, %v1035, 0
        %v1134 = vsel %vm887, %v1037, 0
        %v1137 = vsel %vm887, %v1039, 0
        %v1140 = vsel %vm887, %v1041, 0
        %v1143 = vsel %vm887, %v1043, 0
        %v1146 = vsel %vm887, %v1045, 0
        %v1149 = vsel %vm887, %v1047, 0
        %v1152 = vsel %vm887, %v1049, 0
        %v1155 = vsel %vm887, %v1051, 0
        %v1158 = vsel %vm887, %v1053, 0
        %1160 = vmatpush.bf16.msra.mxu0 %v1119
        %1161 = vmatpush.bf16.msra.mxu0 %v1118
        %1162 = vmatpush.bf16.msra.mxu0 %v1117
        %1163 = vmatpush.bf16.msra.mxu0 %v1116
        %1164 = vmatpush.bf16.msra.mxu0 %v1115
        %1165 = vmatpush.bf16.msra.mxu0 %v1114
        %1166 = vmatpush.bf16.msra.mxu0 %v1113
        %1167 = vmatpush.bf16.msra.mxu0 %v1112
        %1168 = vmatmul.bf16.gmra.mxu0 %v1034
        %v1169 = vpop.f32.mrf.mxu0
        %v1170 = vadd.f32 %v1074, %v1169
        %v1171 = vpop.f32.mrf.mxu0
        %v1172 = vadd.f32 %v1074, %v1171
        %1173 = vmatmul.bf16.gmra.mxu0 %v1036
        %v1174 = vpop.f32.mrf.mxu0
        %v1175 = vadd.f32 %v1074, %v1174
        %v1176 = vpop.f32.mrf.mxu0
        %v1177 = vadd.f32 %v1074, %v1176
        %1178 = vmatmul.bf16.gmra.mxu0 %v1038
        %v1179 = vpop.f32.mrf.mxu0
        %v1180 = vadd.f32 %v1074, %v1179
        %v1181 = vpop.f32.mrf.mxu0
        %v1182 = vadd.f32 %v1074, %v1181
        %1183 = vmatmul.bf16.gmra.mxu0 %v1040
        %v1184 = vpop.f32.mrf.mxu0
        %v1185 = vadd.f32 %v1074, %v1184
        %v1186 = vpop.f32.mrf.mxu0
        %v1187 = vadd.f32 %v1074, %v1186
        %1188 = vmatmul.bf16.gmra.mxu0 %v1042
        %v1189 = vpop.f32.mrf.mxu0
        %v1190 = vadd.f32 %v1074, %v1189
        %v1191 = vpop.f32.mrf.mxu0
        %v1192 = vadd.f32 %v1074, %v1191
        %1193 = vmatmul.bf16.gmra.mxu0 %v1044
        %v1194 = vpop.f32.mrf.mxu0
        %v1195 = vadd.f32 %v1074, %v1194
        %v1196 = vpop.f32.mrf.mxu0
        %v1197 = vadd.f32 %v1074, %v1196
        %1198 = vmatmul.bf16.gmra.mxu0 %v1046
        %v1199 = vpop.f32.mrf.mxu0
        %v1200 = vadd.f32 %v1074, %v1199
        %v1201 = vpop.f32.mrf.mxu0
        %v1202 = vadd.f32 %v1074, %v1201
        %1203 = vmatmul.bf16.gmra.mxu0 %v1048
        %v1204 = vpop.f32.mrf.mxu0
        %v1205 = vadd.f32 %v1074, %v1204
        %v1206 = vpop.f32.mrf.mxu0
        %v1207 = vadd.f32 %v1074, %v1206
        %1208 = vmatmul.bf16.gmra.mxu0 %v1050
        %v1209 = vpop.f32.mrf.mxu0
        %v1210 = vadd.f32 %v1074, %v1209
        %v1211 = vpop.f32.mrf.mxu0
        %v1212 = vadd.f32 %v1074, %v1211
        %1213 = vmatmul.bf16.gmra.mxu0 %v1052
        %v1214 = vpop.f32.mrf.mxu0
        %v1215 = vadd.f32 %v1074, %v1214
        %v1216 = vpop.f32.mrf.mxu0
        %v1217 = vadd.f32 %v1074, %v1216
        %1218 = vdwg.mxu0
        %1219 = vmatpush.bf16.msra.mxu0 0
        %1220 = vmatpush.bf16.msra.mxu0 0
        %1221 = vmatpush.bf16.msra.mxu0 0
        %1222 = vmatpush.bf16.msra.mxu0 0
        %1223 = vmatpush.bf16.msra.mxu0 0
        %1224 = vmatpush.bf16.msra.mxu0 0
        %1225 = vmatpush.bf16.msra.mxu0 0
        %1226 = vmatpush.bf16.msra.mxu0 %v1120
        %1227 = vmatmul.bf16.gmra.mxu0 %v1131
        %v1228 = vpop.f32.mrf.mxu0
        %v1229 = vadd.f32 %v1170, %v1228
        %v1230 = vpop.f32.mrf.mxu0
        %v1231 = vadd.f32 %v1172, %v1230
        %1232 = vmatmul.bf16.gmra.mxu0 %v1134
        %v1233 = vpop.f32.mrf.mxu0
        %v1234 = vadd.f32 %v1175, %v1233
        %v1235 = vpop.f32.mrf.mxu0
        %v1236 = vadd.f32 %v1177, %v1235
        %1237 = vmatmul.bf16.gmra.mxu0 %v1137
        %v1238 = vpop.f32.mrf.mxu0
        %v1239 = vadd.f32 %v1180, %v1238
        %v1240 = vpop.f32.mrf.mxu0
        %v1241 = vadd.f32 %v1182, %v1240
        %1242 = vmatmul.bf16.gmra.mxu0 %v1140
        %v1243 = vpop.f32.mrf.mxu0
        %v1244 = vadd.f32 %v1185, %v1243
        %v1245 = vpop.f32.mrf.mxu0
        %v1246 = vadd.f32 %v1187, %v1245
        %1247 = vmatmul.bf16.gmra.mxu0 %v1143
        %v1248 = vpop.f32.mrf.mxu0
        %v1249 = vadd.f32 %v1190, %v1248
        %v1250 = vpop.f32.mrf.mxu0
        %v1251 = vadd.f32 %v1192, %v1250
        %1252 = vmatmul.bf16.gmra.mxu0 %v1146
        %v1253 = vpop.f32.mrf.mxu0
        %v1254 = vadd.f32 %v1195, %v1253
        %v1255 = vpop.f32.mrf.mxu0
        %v1256 = vadd.f32 %v1197, %v1255
        %1257 = vmatmul.bf16.gmra.mxu0 %v1149
        %v1258 = vpop.f32.mrf.mxu0
        %v1259 = vadd.f32 %v1200, %v1258
        %v1260 = vpop.f32.mrf.mxu0
        %v1261 = vadd.f32 %v1202, %v1260
        %1262 = vmatmul.bf16.gmra.mxu0 %v1152
        %v1263 = vpop.f32.mrf.mxu0
        %v1264 = vadd.f32 %v1205, %v1263
        %v1265 = vpop.f32.mrf.mxu0
        %v1266 = vadd.f32 %v1207, %v1265
        %1267 = vmatmul.bf16.gmra.mxu0 %v1155
        %v1268 = vpop.f32.mrf.mxu0
        %v1269 = vadd.f32 %v1210, %v1268
        %v1270 = vpop.f32.mrf.mxu0
        %v1271 = vadd.f32 %v1212, %v1270
        %1272 = vmatmul.bf16.gmra.mxu0 %v1158
        %v1273 = vpop.f32.mrf.mxu0
        %v1274 = vadd.f32 %v1215, %v1273
        %v1275 = vpop.f32.mrf.mxu0
        %v1276 = vadd.f32 %v1217, %v1275
        %1277 = vdwg.mxu0
        %v1278 = vmax.f32 %v1229, 0.0
        %v1279 = vmax.f32 %v1231, 0.0
        %v1280 = vmax.f32 %v1234, 0.0
        %v1281 = vmax.f32 %v1236, 0.0
        %v1282 = vmax.f32 %v1239, 0.0
        %v1283 = vmax.f32 %v1241, 0.0
        %v1284 = vmax.f32 %v1244, 0.0
        %v1285 = vmax.f32 %v1246, 0.0
        %v1286 = vmax.f32 %v1249, 0.0
        %v1287 = vmax.f32 %v1251, 0.0
        %v1288 = vmax.f32 %v1254, 0.0
        %v1289 = vmax.f32 %v1256, 0.0
        %v1290 = vmax.f32 %v1259, 0.0
        %v1291 = vmax.f32 %v1261, 0.0
        %v1292 = vmax.f32 %v1264, 0.0
        %v1293 = vmax.f32 %v1266, 0.0
        %v1294 = vmax.f32 %v1269, 0.0
        %v1295 = vmax.f32 %v1271, 0.0
        %v1296 = vmax.f32 %v1274, 0.0
        %v1297 = vmax.f32 %v1276, 0.0
        %s1298 = smul.u32 %s24, 8
        %s1299 = ssub.s32 %s1298, 1
        %v1300 = vstv %s1299
        %v1301 = vadd.s32 %v1300, 1
        %v1302 = vadd.s32 %v1300, 2
        %v1303 = vadd.s32 %v1300, 3
        %v1304 = vadd.s32 %v1300, 4
        %v1305 = vadd.s32 %v1300, 5
        %v1306 = vadd.s32 %v1300, 6
        %v1307 = vadd.s32 %v1300, 7
        %v1308 = vadd.s32 %v1300, 8
        %v1309 = vadd.s32 %v1300, 9
        %vm1310 = vcmp.ge.s32.totalorder %v1300, 0
        %vm1311 = vcmp.ge.s32.totalorder %v1301, 0
        %vm1312 = vcmp.ge.s32.totalorder %v1302, 0
        %vm1313 = vcmp.ge.s32.totalorder %v1303, 0
        %vm1314 = vcmp.ge.s32.totalorder %v1304, 0
        %vm1315 = vcmp.ge.s32.totalorder %v1305, 0
        %vm1316 = vcmp.ge.s32.totalorder %v1306, 0
        %vm1317 = vcmp.ge.s32.totalorder %v1307, 0
        %vm1318 = vcmp.ge.s32.totalorder %v1308, 0
        %vm1319 = vcmp.ge.s32.totalorder %v1309, 0
        %vm1320 = vcmp.lt.s32.totalorder %v1300, 16
        %vm1321 = vcmp.lt.s32.totalorder %v1301, 16
        %vm1322 = vcmp.lt.s32.totalorder %v1302, 16
        %vm1323 = vcmp.lt.s32.totalorder %v1303, 16
        %vm1324 = vcmp.lt.s32.totalorder %v1304, 16
        %vm1325 = vcmp.lt.s32.totalorder %v1305, 16
        %vm1326 = vcmp.lt.s32.totalorder %v1306, 16
        %vm1327 = vcmp.lt.s32.totalorder %v1307, 16
        %vm1328 = vcmp.lt.s32.totalorder %v1308, 16
        %vm1329 = vcmp.lt.s32.totalorder %v1309, 16
        %vm1330 = vmand %vm1310, %vm1320
        %vm1331 = vmand %vm1311, %vm1321
        %vm1332 = vmand %vm1312, %vm1322
        %vm1333 = vmand %vm1313, %vm1323
        %vm1334 = vmand %vm1314, %vm1324
        %vm1335 = vmand %vm1315, %vm1325
        %vm1336 = vmand %vm1316, %vm1326
        %vm1337 = vmand %vm1317, %vm1327
        %vm1338 = vmand %vm1318, %vm1328
        %vm1339 = vmand %vm1319, %vm1329
        %v1340 = vsel %vm1330, 1, 0
        %v1341 = vsel %vm1331, 1, 0
        %v1342 = vsel %vm1332, 1, 0
        %v1343 = vsel %vm1333, 1, 0
        %v1344 = vsel %vm1334, 1, 0
        %v1345 = vsel %vm1335, 1, 0
        %v1346 = vsel %vm1336, 1, 0
        %v1347 = vsel %vm1337, 1, 0
        %v1348 = vsel %vm1338, 1, 0
        %v1349 = vsel %vm1339, 1, 0
        %vm1350 = vcmp.eq.s32.totalorder %v1340, 1
        %vm1351 = vcmp.eq.s32.totalorder %v1341, 1
        %vm1352 = vcmp.eq.s32.totalorder %v1342, 1
        %vm1353 = vcmp.eq.s32.totalorder %v1343, 1
        %vm1354 = vcmp.eq.s32.totalorder %v1344, 1
        %vm1355 = vcmp.eq.s32.totalorder %v1345, 1
        %vm1356 = vcmp.eq.s32.totalorder %v1346, 1
        %vm1357 = vcmp.eq.s32.totalorder %v1347, 1
        %vm1358 = vcmp.eq.s32.totalorder %v1348, 1
        %vm1359 = vcmp.eq.s32.totalorder %v1349, 1
        %v1360 = vsel %vm1350, %v1278, 0.0
        %v1361 = vsel %vm1350, %v1279, 0.0
        %v1362 = vsel %vm1351, %v1280, 0.0
        %v1363 = vsel %vm1351, %v1281, 0.0
        %v1364 = vsel %vm1352, %v1282, 0.0
        %v1365 = vsel %vm1352, %v1283, 0.0
        %v1366 = vsel %vm1353, %v1284, 0.0
        %v1367 = vsel %vm1353, %v1285, 0.0
        %v1368 = vsel %vm1354, %v1286, 0.0
        %v1369 = vsel %vm1354, %v1287, 0.0
        %v1370 = vsel %vm1355, %v1288, 0.0
        %v1371 = vsel %vm1355, %v1289, 0.0
        %v1372 = vsel %vm1356, %v1290, 0.0
        %v1373 = vsel %vm1356, %v1291, 0.0
        %v1374 = vsel %vm1357, %v1292, 0.0
        %v1375 = vsel %vm1357, %v1293, 0.0
        %v1376 = vsel %vm1358, %v1294, 0.0
        %v1377 = vsel %vm1358, %v1295, 0.0
        %v1378 = vsel %vm1359, %v1296, 0.0
        %v1379 = vsel %vm1359, %v1297, 0.0
        %vm1400 = vcmask 1040384
        %v1401 = vrot.slane %v1360, 7
        %v1402 = vrot.slane %v1361, 7
        %v1403 = vsel %vm1400, %v1401, %v1402
        %v1404 = vrot.slane %v1362, 7
        %v1405 = vrot.slane %v1363, 7
        %v1406 = vsel %vm1400, %v1404, %v1405
        %v1407 = vrot.slane %v1364, 7
        %v1408 = vrot.slane %v1365, 7
        %v1409 = vsel %vm1400, %v1407, %v1408
        %v1410 = vrot.slane %v1366, 7
        %v1411 = vrot.slane %v1367, 7
        %v1412 = vsel %vm1400, %v1410, %v1411
        %v1413 = vrot.slane %v1368, 7
        %v1414 = vrot.slane %v1369, 7
        %v1415 = vsel %vm1400, %v1413, %v1414
        %v1416 = vrot.slane %v1370, 7
        %v1417 = vrot.slane %v1371, 7
        %v1418 = vsel %vm1400, %v1416, %v1417
        %v1419 = vrot.slane %v1372, 7
        %v1420 = vrot.slane %v1373, 7
        %v1421 = vsel %vm1400, %v1419, %v1420
        %v1422 = vrot.slane %v1374, 7
        %v1423 = vrot.slane %v1375, 7
        %v1424 = vsel %vm1400, %v1422, %v1423
        %v1425 = vrot.slane %v1376, 7
        %v1426 = vrot.slane %v1377, 7
        %v1427 = vsel %vm1400, %v1425, %v1426
        %v1428 = vrot.slane %v1378, 7
        %v1429 = vrot.slane %v1379, 7
        %v1430 = vsel %vm1400, %v1428, %v1429
        %v1459 = vsel %vm1400, 0.0, %v1401
        %v1460 = vsel %vm1400, 0.0, %v1404
        %v1461 = vsel %vm1400, 0.0, %v1407
        %v1462 = vsel %vm1400, 0.0, %v1410
        %v1463 = vsel %vm1400, 0.0, %v1413
        %v1464 = vsel %vm1400, 0.0, %v1416
        %v1465 = vsel %vm1400, 0.0, %v1419
        %v1466 = vsel %vm1400, 0.0, %v1422
        %v1467 = vsel %vm1400, 0.0, %v1425
        %v1468 = vsel %vm1400, 0.0, %v1428
        %v1469 = vsel %vm1400, %v1402, 0.0
        %v1470 = vsel %vm1400, %v1405, 0.0
        %v1471 = vsel %vm1400, %v1408, 0.0
        %v1472 = vsel %vm1400, %v1411, 0.0
        %v1473 = vsel %vm1400, %v1414, 0.0
        %v1474 = vsel %vm1400, %v1417, 0.0
        %v1475 = vsel %vm1400, %v1420, 0.0
        %v1476 = vsel %vm1400, %v1423, 0.0
        %v1477 = vsel %vm1400, %v1426, 0.0
        %v1478 = vsel %vm1400, %v1429, 0.0
        %v1495 = vrot.slane %v1459, 1
        %v1496 = vrot.slane %v1403, 1
        %v1497 = vsel %vm319, %v1495, %v1496
        %v1498 = vrot.slane %v1469, 1
        %v1499 = vsel %vm319, %v1496, %v1498
        %v1500 = vrot.slane %v1460, 1
        %v1501 = vrot.slane %v1406, 1
        %v1502 = vsel %vm319, %v1500, %v1501
        %v1503 = vrot.slane %v1470, 1
        %v1504 = vsel %vm319, %v1501, %v1503
        %v1505 = vrot.slane %v1461, 1
        %v1506 = vrot.slane %v1409, 1
        %v1507 = vsel %vm319, %v1505, %v1506
        %v1508 = vrot.slane %v1471, 1
        %v1509 = vsel %vm319, %v1506, %v1508
        %v1510 = vrot.slane %v1462, 1
        %v1511 = vrot.slane %v1412, 1
        %v1512 = vsel %vm319, %v1510, %v1511
        %v1513 = vrot.slane %v1472, 1
        %v1514 = vsel %vm319, %v1511, %v1513
        %v1515 = vrot.slane %v1463, 1
        %v1516 = vrot.slane %v1415, 1
        %v1517 = vsel %vm319, %v1515, %v1516
        %v1518 = vrot.slane %v1473, 1
        %v1519 = vsel %vm319, %v1516, %v1518
        %v1520 = vrot.slane %v1464, 1
        %v1521 = vrot.slane %v1418, 1
        %v1522 = vsel %vm319, %v1520, %v1521
        %v1523 = vrot.slane %v1474, 1
        %v1524 = vsel %vm319, %v1521, %v1523
        %v1525 = vrot.slane %v1465, 1
        %v1526 = vrot.slane %v1421, 1
        %v1527 = vsel %vm319, %v1525, %v1526
        %v1528 = vrot.slane %v1475, 1
        %v1529 = vsel %vm319, %v1526, %v1528
        %v1530 = vrot.slane %v1466, 1
        %v1531 = vrot.slane %v1424, 1
        %v1532 = vsel %vm319, %v1530, %v1531
        %v1533 = vrot.slane %v1476, 1
        %v1534 = vsel %vm319, %v1531, %v1533
        %v1535 = vrot.slane %v1459, 2
        %v1536 = vrot.slane %v1403, 2
        %v1537 = vsel %vm370, %v1535, %v1536
        %v1538 = vrot.slane %v1469, 2
        %v1539 = vsel %vm370, %v1536, %v1538
        %v1540 = vrot.slane %v1460, 2
        %v1541 = vrot.slane %v1406, 2
        %v1542 = vsel %vm370, %v1540, %v1541
        %v1543 = vrot.slane %v1470, 2
        %v1544 = vsel %vm370, %v1541, %v1543
        %v1545 = vrot.slane %v1461, 2
        %v1546 = vrot.slane %v1409, 2
        %v1547 = vsel %vm370, %v1545, %v1546
        %v1548 = vrot.slane %v1471, 2
        %v1549 = vsel %vm370, %v1546, %v1548
        %v1550 = vrot.slane %v1462, 2
        %v1551 = vrot.slane %v1412, 2
        %v1552 = vsel %vm370, %v1550, %v1551
        %v1553 = vrot.slane %v1472, 2
        %v1554 = vsel %vm370, %v1551, %v1553
        %v1555 = vrot.slane %v1463, 2
        %v1556 = vrot.slane %v1415, 2
        %v1557 = vsel %vm370, %v1555, %v1556
        %v1558 = vrot.slane %v1473, 2
        %v1559 = vsel %vm370, %v1556, %v1558
        %v1560 = vrot.slane %v1464, 2
        %v1561 = vrot.slane %v1418, 2
        %v1562 = vsel %vm370, %v1560, %v1561
        %v1563 = vrot.slane %v1474, 2
        %v1564 = vsel %vm370, %v1561, %v1563
        %v1565 = vrot.slane %v1465, 2
        %v1566 = vrot.slane %v1421, 2
        %v1567 = vsel %vm370, %v1565, %v1566
        %v1568 = vrot.slane %v1475, 2
        %v1569 = vsel %vm370, %v1566, %v1568
        %v1570 = vrot.slane %v1466, 2
        %v1571 = vrot.slane %v1424, 2
        %v1572 = vsel %vm370, %v1570, %v1571
        %v1573 = vrot.slane %v1476, 2
        %v1574 = vsel %vm370, %v1571, %v1573
        %v1577 = vrot.slane %v1467, 1
        %v1578 = vrot.slane %v1427, 1
        %v1579 = vsel %vm319, %v1577, %v1578
        %v1580 = vrot.slane %v1477, 1
        %v1581 = vsel %vm319, %v1578, %v1580
        %v1582 = vrot.slane %v1467, 2
        %v1583 = vrot.slane %v1427, 2
        %v1584 = vsel %vm370, %v1582, %v1583
        %v1585 = vrot.slane %v1477, 2
        %v1586 = vsel %vm370, %v1583, %v1585
        %v1589 = vrot.slane %v1468, 1
        %v1590 = vrot.slane %v1430, 1
        %v1591 = vsel %vm319, %v1589, %v1590
        %v1592 = vrot.slane %v1478, 1
        %v1593 = vsel %vm319, %v1590, %v1592
        %v1594 = vrot.slane %v1468, 2
        %v1595 = vrot.slane %v1430, 2
        %v1596 = vsel %vm370, %v1594, %v1595
        %v1597 = vrot.slane %v1478, 2
        %v1598 = vsel %vm370, %v1595, %v1597
        %1615 = vrot.lane.b32.xlu0 %v1497, 16
        %v1616 = vpop.permute.xlu0 %1615
        %1617 = vrot.lane.b32.xlu0 %v1499, 16
        %v1618 = vpop.permute.xlu0 %1617
        %1619 = vrot.lane.b32.xlu0 %v1502, 16
        %v1620 = vpop.permute.xlu0 %1619
        %1621 = vrot.lane.b32.xlu0 %v1504, 16
        %v1622 = vpop.permute.xlu0 %1621
        %1623 = vrot.lane.b32.xlu0 %v1507, 16
        %v1624 = vpop.permute.xlu0 %1623
        %1625 = vrot.lane.b32.xlu0 %v1509, 16
        %v1626 = vpop.permute.xlu0 %1625
        %1627 = vrot.lane.b32.xlu0 %v1512, 16
        %v1628 = vpop.permute.xlu0 %1627
        %1629 = vrot.lane.b32.xlu0 %v1514, 16
        %v1630 = vpop.permute.xlu0 %1629
        %1631 = vrot.lane.b32.xlu0 %v1517, 16
        %v1632 = vpop.permute.xlu0 %1631
        %1633 = vrot.lane.b32.xlu0 %v1519, 16
        %v1634 = vpop.permute.xlu0 %1633
        %1635 = vrot.lane.b32.xlu0 %v1522, 16
        %v1636 = vpop.permute.xlu0 %1635
        %1637 = vrot.lane.b32.xlu0 %v1524, 16
        %v1638 = vpop.permute.xlu0 %1637
        %1639 = vrot.lane.b32.xlu0 %v1527, 16
        %v1640 = vpop.permute.xlu0 %1639
        %1641 = vrot.lane.b32.xlu0 %v1529, 16
        %v1642 = vpop.permute.xlu0 %1641
        %1643 = vrot.lane.b32.xlu0 %v1532, 16
        %v1644 = vpop.permute.xlu0 %1643
        %1645 = vrot.lane.b32.xlu0 %v1534, 16
        %v1646 = vpop.permute.xlu0 %1645
        %1663 = vrot.lane.b32.xlu0 %v1537, 32
        %v1664 = vpop.permute.xlu0 %1663
        %1665 = vrot.lane.b32.xlu0 %v1539, 32
        %v1666 = vpop.permute.xlu0 %1665
        %1667 = vrot.lane.b32.xlu0 %v1542, 32
        %v1668 = vpop.permute.xlu0 %1667
        %1669 = vrot.lane.b32.xlu0 %v1544, 32
        %v1670 = vpop.permute.xlu0 %1669
        %1671 = vrot.lane.b32.xlu0 %v1547, 32
        %v1672 = vpop.permute.xlu0 %1671
        %1673 = vrot.lane.b32.xlu0 %v1549, 32
        %v1674 = vpop.permute.xlu0 %1673
        %1675 = vrot.lane.b32.xlu0 %v1552, 32
        %v1676 = vpop.permute.xlu0 %1675
        %1677 = vrot.lane.b32.xlu0 %v1554, 32
        %v1678 = vpop.permute.xlu0 %1677
        %1679 = vrot.lane.b32.xlu0 %v1557, 32
        %v1680 = vpop.permute.xlu0 %1679
        %1681 = vrot.lane.b32.xlu0 %v1559, 32
        %v1682 = vpop.permute.xlu0 %1681
        %1683 = vrot.lane.b32.xlu0 %v1562, 32
        %v1684 = vpop.permute.xlu0 %1683
        %1685 = vrot.lane.b32.xlu0 %v1564, 32
        %v1686 = vpop.permute.xlu0 %1685
        %1687 = vrot.lane.b32.xlu0 %v1567, 32
        %v1688 = vpop.permute.xlu0 %1687
        %1689 = vrot.lane.b32.xlu0 %v1569, 32
        %v1690 = vpop.permute.xlu0 %1689
        %1691 = vrot.lane.b32.xlu0 %v1572, 32
        %v1692 = vpop.permute.xlu0 %1691
        %1693 = vrot.lane.b32.xlu0 %v1574, 32
        %v1694 = vpop.permute.xlu0 %1693
        %1711 = vrot.lane.b32.xlu0 %v1460, 48
        %v1712 = vpop.permute.xlu0 %1711
        %1713 = vrot.lane.b32.xlu0 %v1406, 48
        %v1714 = vpop.permute.xlu0 %1713
        %1715 = vrot.lane.b32.xlu0 %v1461, 48
        %v1716 = vpop.permute.xlu0 %1715
        %1717 = vrot.lane.b32.xlu0 %v1409, 48
        %v1718 = vpop.permute.xlu0 %1717
        %1719 = vrot.lane.b32.xlu0 %v1462, 48
        %v1720 = vpop.permute.xlu0 %1719
        %1721 = vrot.lane.b32.xlu0 %v1412, 48
        %v1722 = vpop.permute.xlu0 %1721
        %1723 = vrot.lane.b32.xlu0 %v1463, 48
        %v1724 = vpop.permute.xlu0 %1723
        %1725 = vrot.lane.b32.xlu0 %v1415, 48
        %v1726 = vpop.permute.xlu0 %1725
        %1727 = vrot.lane.b32.xlu0 %v1464, 48
        %v1728 = vpop.permute.xlu0 %1727
        %1729 = vrot.lane.b32.xlu0 %v1418, 48
        %v1730 = vpop.permute.xlu0 %1729
        %1731 = vrot.lane.b32.xlu0 %v1465, 48
        %v1732 = vpop.permute.xlu0 %1731
        %1733 = vrot.lane.b32.xlu0 %v1421, 48
        %v1734 = vpop.permute.xlu0 %1733
        %1735 = vrot.lane.b32.xlu0 %v1466, 48
        %v1736 = vpop.permute.xlu0 %1735
        %1737 = vrot.lane.b32.xlu0 %v1424, 48
        %v1738 = vpop.permute.xlu0 %1737
        %1739 = vrot.lane.b32.xlu0 %v1467, 48
        %v1740 = vpop.permute.xlu0 %1739
        %1741 = vrot.lane.b32.xlu0 %v1427, 48
        %v1742 = vpop.permute.xlu0 %1741
        %1759 = vrot.lane.b32.xlu0 %v1502, 64
        %v1760 = vpop.permute.xlu0 %1759
        %1761 = vrot.lane.b32.xlu0 %v1504, 64
        %v1762 = vpop.permute.xlu0 %1761
        %1763 = vrot.lane.b32.xlu0 %v1507, 64
        %v1764 = vpop.permute.xlu0 %1763
        %1765 = vrot.lane.b32.xlu0 %v1509, 64
        %v1766 = vpop.permute.xlu0 %1765
        %1767 = vrot.lane.b32.xlu0 %v1512, 64
        %v1768 = vpop.permute.xlu0 %1767
        %1769 = vrot.lane.b32.xlu0 %v1514, 64
        %v1770 = vpop.permute.xlu0 %1769
        %1771 = vrot.lane.b32.xlu0 %v1517, 64
        %v1772 = vpop.permute.xlu0 %1771
        %1773 = vrot.lane.b32.xlu0 %v1519, 64
        %v1774 = vpop.permute.xlu0 %1773
        %1775 = vrot.lane.b32.xlu0 %v1522, 64
        %v1776 = vpop.permute.xlu0 %1775
        %1777 = vrot.lane.b32.xlu0 %v1524, 64
        %v1778 = vpop.permute.xlu0 %1777
        %1779 = vrot.lane.b32.xlu0 %v1527, 64
        %v1780 = vpop.permute.xlu0 %1779
        %1781 = vrot.lane.b32.xlu0 %v1529, 64
        %v1782 = vpop.permute.xlu0 %1781
        %1783 = vrot.lane.b32.xlu0 %v1532, 64
        %v1784 = vpop.permute.xlu0 %1783
        %1785 = vrot.lane.b32.xlu0 %v1534, 64
        %v1786 = vpop.permute.xlu0 %1785
        %1787 = vrot.lane.b32.xlu0 %v1579, 64
        %v1788 = vpop.permute.xlu0 %1787
        %1789 = vrot.lane.b32.xlu0 %v1581, 64
        %v1790 = vpop.permute.xlu0 %1789
        %1807 = vrot.lane.b32.xlu0 %v1542, 80
        %v1808 = vpop.permute.xlu0 %1807
        %1809 = vrot.lane.b32.xlu0 %v1544, 80
        %v1810 = vpop.permute.xlu0 %1809
        %1811 = vrot.lane.b32.xlu0 %v1547, 80
        %v1812 = vpop.permute.xlu0 %1811
        %1813 = vrot.lane.b32.xlu0 %v1549, 80
        %v1814 = vpop.permute.xlu0 %1813
        %1815 = vrot.lane.b32.xlu0 %v1552, 80
        %v1816 = vpop.permute.xlu0 %1815
        %1817 = vrot.lane.b32.xlu0 %v1554, 80
        %v1818 = vpop.permute.xlu0 %1817
        %1819 = vrot.lane.b32.xlu0 %v1557, 80
        %v1820 = vpop.permute.xlu0 %1819
        %1821 = vrot.lane.b32.xlu0 %v1559, 80
        %v1822 = vpop.permute.xlu0 %1821
        %1823 = vrot.lane.b32.xlu0 %v1562, 80
        %v1824 = vpop.permute.xlu0 %1823
        %1825 = vrot.lane.b32.xlu0 %v1564, 80
        %v1826 = vpop.permute.xlu0 %1825
        %1827 = vrot.lane.b32.xlu0 %v1567, 80
        %v1828 = vpop.permute.xlu0 %1827
        %1829 = vrot.lane.b32.xlu0 %v1569, 80
        %v1830 = vpop.permute.xlu0 %1829
        %1831 = vrot.lane.b32.xlu0 %v1572, 80
        %v1832 = vpop.permute.xlu0 %1831
        %1833 = vrot.lane.b32.xlu0 %v1574, 80
        %v1834 = vpop.permute.xlu0 %1833
        %1835 = vrot.lane.b32.xlu0 %v1584, 80
        %v1836 = vpop.permute.xlu0 %1835
        %1837 = vrot.lane.b32.xlu0 %v1586, 80
        %v1838 = vpop.permute.xlu0 %1837
        %1855 = vrot.lane.b32.xlu0 %v1461, 96
        %v1856 = vpop.permute.xlu0 %1855
        %1857 = vrot.lane.b32.xlu0 %v1409, 96
        %v1858 = vpop.permute.xlu0 %1857
        %1859 = vrot.lane.b32.xlu0 %v1462, 96
        %v1860 = vpop.permute.xlu0 %1859
        %1861 = vrot.lane.b32.xlu0 %v1412, 96
        %v1862 = vpop.permute.xlu0 %1861
        %1863 = vrot.lane.b32.xlu0 %v1463, 96
        %v1864 = vpop.permute.xlu0 %1863
        %1865 = vrot.lane.b32.xlu0 %v1415, 96
        %v1866 = vpop.permute.xlu0 %1865
        %1867 = vrot.lane.b32.xlu0 %v1464, 96
        %v1868 = vpop.permute.xlu0 %1867
        %1869 = vrot.lane.b32.xlu0 %v1418, 96
        %v1870 = vpop.permute.xlu0 %1869
        %1871 = vrot.lane.b32.xlu0 %v1465, 96
        %v1872 = vpop.permute.xlu0 %1871
        %1873 = vrot.lane.b32.xlu0 %v1421, 96
        %v1874 = vpop.permute.xlu0 %1873
        %1875 = vrot.lane.b32.xlu0 %v1466, 96
        %v1876 = vpop.permute.xlu0 %1875
        %1877 = vrot.lane.b32.xlu0 %v1424, 96
        %v1878 = vpop.permute.xlu0 %1877
        %1879 = vrot.lane.b32.xlu0 %v1467, 96
        %v1880 = vpop.permute.xlu0 %1879
        %1881 = vrot.lane.b32.xlu0 %v1427, 96
        %v1882 = vpop.permute.xlu0 %1881
        %1883 = vrot.lane.b32.xlu0 %v1468, 96
        %v1884 = vpop.permute.xlu0 %1883
        %1885 = vrot.lane.b32.xlu0 %v1430, 96
        %v1886 = vpop.permute.xlu0 %1885
        %1903 = vrot.lane.b32.xlu0 %v1507, 112
        %v1904 = vpop.permute.xlu0 %1903
        %1905 = vrot.lane.b32.xlu0 %v1509, 112
        %v1906 = vpop.permute.xlu0 %1905
        %1907 = vrot.lane.b32.xlu0 %v1512, 112
        %v1908 = vpop.permute.xlu0 %1907
        %1909 = vrot.lane.b32.xlu0 %v1514, 112
        %v1910 = vpop.permute.xlu0 %1909
        %1911 = vrot.lane.b32.xlu0 %v1517, 112
        %v1912 = vpop.permute.xlu0 %1911
        %1913 = vrot.lane.b32.xlu0 %v1519, 112
        %v1914 = vpop.permute.xlu0 %1913
        %1915 = vrot.lane.b32.xlu0 %v1522, 112
        %v1916 = vpop.permute.xlu0 %1915
        %1917 = vrot.lane.b32.xlu0 %v1524, 112
        %v1918 = vpop.permute.xlu0 %1917
        %1919 = vrot.lane.b32.xlu0 %v1527, 112
        %v1920 = vpop.permute.xlu0 %1919
        %1921 = vrot.lane.b32.xlu0 %v1529, 112
        %v1922 = vpop.permute.xlu0 %1921
        %1923 = vrot.lane.b32.xlu0 %v1532, 112
        %v1924 = vpop.permute.xlu0 %1923
        %1925 = vrot.lane.b32.xlu0 %v1534, 112
        %v1926 = vpop.permute.xlu0 %1925
        %1927 = vrot.lane.b32.xlu0 %v1579, 112
        %v1928 = vpop.permute.xlu0 %1927
        %1929 = vrot.lane.b32.xlu0 %v1581, 112
        %v1930 = vpop.permute.xlu0 %1929
        %1931 = vrot.lane.b32.xlu0 %v1591, 112
        %v1932 = vpop.permute.xlu0 %1931
        %1933 = vrot.lane.b32.xlu0 %v1593, 112
        %v1934 = vpop.permute.xlu0 %1933
        %v1951 = vsel %vm887, %v1459, %v1616
        %v1952 = vsel %vm887, %v1403, %v1618
        %v1953 = vsel %vm887, %v1460, %v1620
        %v1954 = vsel %vm887, %v1406, %v1622
        %v1955 = vsel %vm887, %v1461, %v1624
        %v1956 = vsel %vm887, %v1409, %v1626
        %v1957 = vsel %vm887, %v1462, %v1628
        %v1958 = vsel %vm887, %v1412, %v1630
        %v1959 = vsel %vm887, %v1463, %v1632
        %v1960 = vsel %vm887, %v1415, %v1634
        %v1961 = vsel %vm887, %v1464, %v1636
        %v1962 = vsel %vm887, %v1418, %v1638
        %v1963 = vsel %vm887, %v1465, %v1640
        %v1964 = vsel %vm887, %v1421, %v1642
        %v1965 = vsel %vm887, %v1466, %v1644
        %v1966 = vsel %vm887, %v1424, %v1646
        %v1967 = vsel %vm908, %v1951, %v1664
        %v1968 = vsel %vm908, %v1952, %v1666
        %v1969 = vsel %vm908, %v1953, %v1668
        %v1970 = vsel %vm908, %v1954, %v1670
        %v1971 = vsel %vm908, %v1955, %v1672
        %v1972 = vsel %vm908, %v1956, %v1674
        %v1973 = vsel %vm908, %v1957, %v1676
        %v1974 = vsel %vm908, %v1958, %v1678
        %v1975 = vsel %vm908, %v1959, %v1680
        %v1976 = vsel %vm908, %v1960, %v1682
        %v1977 = vsel %vm908, %v1961, %v1684
        %v1978 = vsel %vm908, %v1962, %v1686
        %v1979 = vsel %vm908, %v1963, %v1688
        %v1980 = vsel %vm908, %v1964, %v1690
        %v1981 = vsel %vm908, %v1965, %v1692
        %v1982 = vsel %vm908, %v1966, %v1694
        %v1983 = vsel %vm929, %v1967, %v1712
        %v1984 = vsel %vm929, %v1968, %v1714
        %v1985 = vsel %vm929, %v1969, %v1716
        %v1986 = vsel %vm929, %v1970, %v1718
        %v1987 = vsel %vm929, %v1971, %v1720
        %v1988 = vsel %vm929, %v1972, %v1722
        %v1989 = vsel %vm929, %v1973, %v1724
        %v1990 = vsel %vm929, %v1974, %v1726
        %v1991 = vsel %vm929, %v1975, %v1728
        %v1992 = vsel %vm929, %v1976, %v1730
        %v1993 = vsel %vm929, %v1977, %v1732
        %v1994 = vsel %vm929, %v1978, %v1734
        %v1995 = vsel %vm929, %v1979, %v1736
        %v1996 = vsel %vm929, %v1980, %v1738
        %v1997 = vsel %vm929, %v1981, %v1740
        %v1998 = vsel %vm929, %v1982, %v1742
        %v1999 = vsel %vm950, %v1983, %v1760
        %v2000 = vsel %vm950, %v1984, %v1762
        %v2001 = vsel %vm950, %v1985, %v1764
        %v2002 = vsel %vm950, %v1986, %v1766
        %v2003 = vsel %vm950, %v1987, %v1768
        %v2004 = vsel %vm950, %v1988, %v1770
        %v2005 = vsel %vm950, %v1989, %v1772
        %v2006 = vsel %vm950, %v1990, %v1774
        %v2007 = vsel %vm950, %v1991, %v1776
        %v2008 = vsel %vm950, %v1992, %v1778
        %v2009 = vsel %vm950, %v1993, %v1780
        %v2010 = vsel %vm950, %v1994, %v1782
        %v2011 = vsel %vm950, %v1995, %v1784
        %v2012 = vsel %vm950, %v1996, %v1786
        %v2013 = vsel %vm950, %v1997, %v1788
        %v2014 = vsel %vm950, %v1998, %v1790
        %v2015 = vsel %vm971, %v1999, %v1808
        %v2016 = vsel %vm971, %v2000, %v1810
        %v2017 = vsel %vm971, %v2001, %v1812
        %v2018 = vsel %vm971, %v2002, %v1814
        %v2019 = vsel %vm971, %v2003, %v1816
        %v2020 = vsel %vm971, %v2004, %v1818
        %v2021 = vsel %vm971, %v2005, %v1820
        %v2022 = vsel %vm971, %v2006, %v1822
        %v2023 = vsel %vm971, %v2007, %v1824
        %v2024 = vsel %vm971, %v2008, %v1826
        %v2025 = vsel %vm971, %v2009, %v1828
        %v2026 = vsel %vm971, %v2010, %v1830
        %v2027 = vsel %vm971, %v2011, %v1832
        %v2028 = vsel %vm971, %v2012, %v1834
        %v2029 = vsel %vm971, %v2013, %v1836
        %v2030 = vsel %vm971, %v2014, %v1838
        %v2031 = vsel %vm992, %v2015, %v1856
        %v2032 = vsel %vm992, %v2016, %v1858
        %v2033 = vsel %vm992, %v2017, %v1860
        %v2034 = vsel %vm992, %v2018, %v1862
        %v2035 = vsel %vm992, %v2019, %v1864
        %v2036 = vsel %vm992, %v2020, %v1866
        %v2037 = vsel %vm992, %v2021, %v1868
        %v2038 = vsel %vm992, %v2022, %v1870
        %v2039 = vsel %vm992, %v2023, %v1872
        %v2040 = vsel %vm992, %v2024, %v1874
        %v2041 = vsel %vm992, %v2025, %v1876
        %v2042 = vsel %vm992, %v2026, %v1878
        %v2043 = vsel %vm992, %v2027, %v1880
        %v2044 = vsel %vm992, %v2028, %v1882
        %v2045 = vsel %vm992, %v2029, %v1884
        %v2046 = vsel %vm992, %v2030, %v1886
        %v2047 = vsel %vm1013, %v2031, %v1904
        %v2048 = vsel %vm1013, %v2032, %v1906
        %v2049 = vsel %vm1013, %v2033, %v1908
        %v2050 = vsel %vm1013, %v2034, %v1910
        %v2051 = vsel %vm1013, %v2035, %v1912
        %v2052 = vsel %vm1013, %v2036, %v1914
        %v2053 = vsel %vm1013, %v2037, %v1916
        %v2054 = vsel %vm1013, %v2038, %v1918
        %v2055 = vsel %vm1013, %v2039, %v1920
        %v2056 = vsel %vm1013, %v2040, %v1922
        %v2057 = vsel %vm1013, %v2041, %v1924
        %v2058 = vsel %vm1013, %v2042, %v1926
        %v2059 = vsel %vm1013, %v2043, %v1928
        %v2060 = vsel %vm1013, %v2044, %v1930
        %v2061 = vsel %vm1013, %v2045, %v1932
        %v2062 = vsel %vm1013, %v2046, %v1934
        %v2063 = vpack.c.bf16 %v2048, %v2047
        %v2064 = vpack.c.bf16 %v1549, %v1547
        %v2065 = vpack.c.bf16 %v2050, %v2049
        %v2066 = vpack.c.bf16 %v1554, %v1552
        %v2067 = vpack.c.bf16 %v2052, %v2051
        %v2068 = vpack.c.bf16 %v1559, %v1557
        %v2069 = vpack.c.bf16 %v2054, %v2053
        %v2070 = vpack.c.bf16 %v1564, %v1562
        %v2071 = vpack.c.bf16 %v2056, %v2055
        %v2072 = vpack.c.bf16 %v1569, %v1567
        %v2073 = vpack.c.bf16 %v2058, %v2057
        %v2074 = vpack.c.bf16 %v1574, %v1572
        %v2075 = vpack.c.bf16 %v2060, %v2059
        %v2076 = vpack.c.bf16 %v1586, %v1584
        %v2077 = vpack.c.bf16 %v2062, %v2061
        %v2078 = vpack.c.bf16 %v1598, %v1596
        %v2079 = vld [vmem:[%s3] sm:$0xf]
        %v2080 = vld [vmem:[%s3 + $0x4] sm:$0xf]
        %v2081 = vld [vmem:[%s3 + $0x8] sm:$0xf]
        %v2082 = vld [vmem:[%s3 + $0xc] sm:$0xf]
        %v2083 = vld [vmem:[%s3 + $0x10] sm:$0xf]
        %v2084 = vld [vmem:[%s3 + $0x14] sm:$0xf]
        %v2085 = vld [vmem:[%s3 + $0x18] sm:$0xf]
        %v2086 = vld [vmem:[%s3 + $0x1c] sm:$0xf]
        %v2087 = vld [vmem:[%s3 + $0x20] sm:$0xf]
        %v2088 = vld [vmem:[%s3 + $0x24] sm:$0xf]
        %v2089 = vld [vmem:[%s3 + $0x28] sm:$0xf]
        %v2090 = vld [vmem:[%s3 + $0x2c] sm:$0xf]
        %v2091 = vld [vmem:[%s3 + $0x30] sm:$0xf]
        %v2092 = vld [vmem:[%s3 + $0x34] sm:$0xf]
        %v2093 = vld [vmem:[%s3 + $0x38] sm:$0xf]
        %v2094 = vld [vmem:[%s3 + $0x3c] sm:$0xf]
        %v2095 = vld [vmem:[%s3 + $0x40] sm:$0xf]
        %v2096 = vld [vmem:[%s3 + $0x44] sm:$0xf]
        %v2097 = vld [vmem:[%s4] sm:$0x1]
        %v2099 = vperm.slane %v2097, 0
        %v2119 = vunpack.c.l.b16 %v2079
        %v2120 = vunpack.c.l.b16 %v2080
        %v2121 = vunpack.c.l.b16 %v2081
        %v2122 = vunpack.c.l.b16 %v2082
        %v2123 = vunpack.c.l.b16 %v2083
        %v2124 = vunpack.c.l.b16 %v2084
        %v2125 = vunpack.c.l.b16 %v2085
        %v2126 = vunpack.c.l.b16 %v2086
        %v2127 = vunpack.c.l.b16 %v2087
        %v2128 = vunpack.c.l.b16 %v2088
        %v2129 = vunpack.c.l.b16 %v2089
        %v2130 = vunpack.c.l.b16 %v2090
        %v2131 = vunpack.c.l.b16 %v2091
        %v2132 = vunpack.c.l.b16 %v2092
        %v2133 = vunpack.c.l.b16 %v2093
        %v2134 = vunpack.c.l.b16 %v2094
        %v2135 = vunpack.c.l.b16 %v2095
        %v2136 = vunpack.c.l.b16 %v2096
        %v2137 = vpack.c.b16 %v2120, %v2119
        %v2138 = vpack.c.b16 %v2122, %v2121
        %v2139 = vpack.c.b16 %v2124, %v2123
        %v2140 = vpack.c.b16 %v2126, %v2125
        %v2141 = vpack.c.b16 %v2128, %v2127
        %v2142 = vpack.c.b16 %v2130, %v2129
        %v2143 = vpack.c.b16 %v2132, %v2131
        %v2144 = vpack.c.b16 %v2134, %v2133
        %v2145 = vpack.c.b16 %v2136, %v2135
        %v2156 = vsel %vm887, %v2064, 0
        %v2159 = vsel %vm887, %v2066, 0
        %v2162 = vsel %vm887, %v2068, 0
        %v2165 = vsel %vm887, %v2070, 0
        %v2168 = vsel %vm887, %v2072, 0
        %v2171 = vsel %vm887, %v2074, 0
        %v2174 = vsel %vm887, %v2076, 0
        %v2177 = vsel %vm887, %v2078, 0
        %2179 = vmatpush.bf16.msra.mxu0 %v2144
        %2180 = vmatpush.bf16.msra.mxu0 %v2143
        %2181 = vmatpush.bf16.msra.mxu0 %v2142
        %2182 = vmatpush.bf16.msra.mxu0 %v2141
        %2183 = vmatpush.bf16.msra.mxu0 %v2140
        %2184 = vmatpush.bf16.msra.mxu0 %v2139
        %2185 = vmatpush.bf16.msra.mxu0 %v2138
        %2186 = vmatpush.bf16.msra.mxu0 %v2137
        %2187 = vmatmul.bf16.gmra.mxu0 %v2063
        %v2188 = vpop.f32.mrf.mxu0
        %v2189 = vadd.f32 %v2099, %v2188
        %v2190 = vpop.f32.mrf.mxu0
        %v2191 = vadd.f32 %v2099, %v2190
        %2192 = vmatmul.bf16.gmra.mxu0 %v2065
        %v2193 = vpop.f32.mrf.mxu0
        %v2194 = vadd.f32 %v2099, %v2193
        %v2195 = vpop.f32.mrf.mxu0
        %v2196 = vadd.f32 %v2099, %v2195
        %2197 = vmatmul.bf16.gmra.mxu0 %v2067
        %v2198 = vpop.f32.mrf.mxu0
        %v2199 = vadd.f32 %v2099, %v2198
        %v2200 = vpop.f32.mrf.mxu0
        %v2201 = vadd.f32 %v2099, %v2200
        %2202 = vmatmul.bf16.gmra.mxu0 %v2069
        %v2203 = vpop.f32.mrf.mxu0
        %v2204 = vadd.f32 %v2099, %v2203
        %v2205 = vpop.f32.mrf.mxu0
        %v2206 = vadd.f32 %v2099, %v2205
        %2207 = vmatmul.bf16.gmra.mxu0 %v2071
        %v2208 = vpop.f32.mrf.mxu0
        %v2209 = vadd.f32 %v2099, %v2208
        %v2210 = vpop.f32.mrf.mxu0
        %v2211 = vadd.f32 %v2099, %v2210
        %2212 = vmatmul.bf16.gmra.mxu0 %v2073
        %v2213 = vpop.f32.mrf.mxu0
        %v2214 = vadd.f32 %v2099, %v2213
        %v2215 = vpop.f32.mrf.mxu0
        %v2216 = vadd.f32 %v2099, %v2215
        %2217 = vmatmul.bf16.gmra.mxu0 %v2075
        %v2218 = vpop.f32.mrf.mxu0
        %v2219 = vadd.f32 %v2099, %v2218
        %v2220 = vpop.f32.mrf.mxu0
        %v2221 = vadd.f32 %v2099, %v2220
        %2222 = vmatmul.bf16.gmra.mxu0 %v2077
        %v2223 = vpop.f32.mrf.mxu0
        %v2224 = vadd.f32 %v2099, %v2223
        %v2225 = vpop.f32.mrf.mxu0
        %v2226 = vadd.f32 %v2099, %v2225
        %2227 = vdwg.mxu0
        %2228 = vmatpush.bf16.msra.mxu0 0
        %2229 = vmatpush.bf16.msra.mxu0 0
        %2230 = vmatpush.bf16.msra.mxu0 0
        %2231 = vmatpush.bf16.msra.mxu0 0
        %2232 = vmatpush.bf16.msra.mxu0 0
        %2233 = vmatpush.bf16.msra.mxu0 0
        %2234 = vmatpush.bf16.msra.mxu0 0
        %2235 = vmatpush.bf16.msra.mxu0 %v2145
        %2236 = vmatmul.bf16.gmra.mxu0 %v2156
        %v2237 = vpop.f32.mrf.mxu0
        %v2238 = vadd.f32 %v2189, %v2237
        %v2239 = vpop.f32.mrf.mxu0
        %v2240 = vadd.f32 %v2191, %v2239
        %2241 = vmatmul.bf16.gmra.mxu0 %v2159
        %v2242 = vpop.f32.mrf.mxu0
        %v2243 = vadd.f32 %v2194, %v2242
        %v2244 = vpop.f32.mrf.mxu0
        %v2245 = vadd.f32 %v2196, %v2244
        %2246 = vmatmul.bf16.gmra.mxu0 %v2162
        %v2247 = vpop.f32.mrf.mxu0
        %v2248 = vadd.f32 %v2199, %v2247
        %v2249 = vpop.f32.mrf.mxu0
        %v2250 = vadd.f32 %v2201, %v2249
        %2251 = vmatmul.bf16.gmra.mxu0 %v2165
        %v2252 = vpop.f32.mrf.mxu0
        %v2253 = vadd.f32 %v2204, %v2252
        %v2254 = vpop.f32.mrf.mxu0
        %v2255 = vadd.f32 %v2206, %v2254
        %2256 = vmatmul.bf16.gmra.mxu0 %v2168
        %v2257 = vpop.f32.mrf.mxu0
        %v2258 = vadd.f32 %v2209, %v2257
        %v2259 = vpop.f32.mrf.mxu0
        %v2260 = vadd.f32 %v2211, %v2259
        %2261 = vmatmul.bf16.gmra.mxu0 %v2171
        %v2262 = vpop.f32.mrf.mxu0
        %v2263 = vadd.f32 %v2214, %v2262
        %v2264 = vpop.f32.mrf.mxu0
        %v2265 = vadd.f32 %v2216, %v2264
        %2266 = vmatmul.bf16.gmra.mxu0 %v2174
        %v2267 = vpop.f32.mrf.mxu0
        %v2268 = vadd.f32 %v2219, %v2267
        %v2269 = vpop.f32.mrf.mxu0
        %v2270 = vadd.f32 %v2221, %v2269
        %2271 = vmatmul.bf16.gmra.mxu0 %v2177
        %v2272 = vpop.f32.mrf.mxu0
        %v2273 = vadd.f32 %v2224, %v2272
        %v2274 = vpop.f32.mrf.mxu0
        %v2275 = vadd.f32 %v2226, %v2274
        %2276 = vdwg.mxu0
        %v2293 = vrot.slane %v2238, 7
        %v2294 = vrot.slane %v2240, 7
        %v2295 = vsel %vm1400, %v2293, %v2294
        %v2296 = vrot.slane %v2243, 7
        %v2297 = vrot.slane %v2245, 7
        %v2298 = vsel %vm1400, %v2296, %v2297
        %v2299 = vrot.slane %v2248, 7
        %v2300 = vrot.slane %v2250, 7
        %v2301 = vsel %vm1400, %v2299, %v2300
        %v2302 = vrot.slane %v2253, 7
        %v2303 = vrot.slane %v2255, 7
        %v2304 = vsel %vm1400, %v2302, %v2303
        %v2305 = vrot.slane %v2258, 7
        %v2306 = vrot.slane %v2260, 7
        %v2307 = vsel %vm1400, %v2305, %v2306
        %v2308 = vrot.slane %v2263, 7
        %v2309 = vrot.slane %v2265, 7
        %v2310 = vsel %vm1400, %v2308, %v2309
        %v2311 = vrot.slane %v2268, 7
        %v2312 = vrot.slane %v2270, 7
        %v2313 = vsel %vm1400, %v2311, %v2312
        %v2314 = vrot.slane %v2273, 7
        %v2315 = vrot.slane %v2275, 7
        %v2316 = vsel %vm1400, %v2314, %v2315
        %v2341 = vadd.f32 %v259, %v2293
        %v2342 = vadd.f32 %v260, %v2295
        %v2343 = vadd.f32 %v261, %v2294
        %v2344 = vadd.f32 %v262, %v2296
        %v2345 = vadd.f32 %v263, %v2298
        %v2346 = vadd.f32 %v264, %v2297
        %v2347 = vadd.f32 %v265, %v2299
        %v2348 = vadd.f32 %v266, %v2301
        %v2349 = vadd.f32 %v267, %v2300
        %v2350 = vadd.f32 %v268, %v2302
        %v2351 = vadd.f32 %v269, %v2304
        %v2352 = vadd.f32 %v270, %v2303
        %v2353 = vadd.f32 %v271, %v2305
        %v2354 = vadd.f32 %v272, %v2307
        %v2355 = vadd.f32 %v273, %v2306
        %v2356 = vadd.f32 %v274, %v2308
        %v2357 = vadd.f32 %v275, %v2310
        %v2358 = vadd.f32 %v276, %v2309
        %v2359 = vadd.f32 %v277, %v2311
        %v2360 = vadd.f32 %v278, %v2313
        %v2361 = vadd.f32 %v279, %v2312
        %v2362 = vadd.f32 %v280, %v2314
        %v2363 = vadd.f32 %v281, %v2316
        %v2364 = vadd.f32 %v282, %v2315
        %vm2365 = vcmask 130049
        %2366 = vst.msk [vmem:[%s241 - $0x1] sm:$0xfe] %vm2365, %v2341
        %2367 = vst.msk [vmem:[%s241 + $0x7] sm:$0xff] %vm887, %v2342
        %vm2368 = vcmask 122880
        %2369 = vst.msk [vmem:[%s241 + $0xf] sm:$0x1] %vm2368, %v2343
        %2370 = vst.msk [vmem:[%s241 + $0xf] sm:$0xfe] %vm2365, %v2344
        %2371 = vst.msk [vmem:[%s241 + $0x17] sm:$0xff] %vm887, %v2345
        %2372 = vst.msk [vmem:[%s241 + $0x1f] sm:$0x1] %vm2368, %v2346
        %2373 = vst.msk [vmem:[%s241 + $0x1f] sm:$0xfe] %vm2365, %v2347
        %2374 = vst.msk [vmem:[%s241 + $0x27] sm:$0xff] %vm887, %v2348
        %2375 = vst.msk [vmem:[%s241 + $0x2f] sm:$0x1] %vm2368, %v2349
        %2376 = vst.msk [vmem:[%s241 + $0x2f] sm:$0xfe] %vm2365, %v2350
        %2377 = vst.msk [vmem:[%s241 + $0x37] sm:$0xff] %vm887, %v2351
        %2378 = vst.msk [vmem:[%s241 + $0x3f] sm:$0x1] %vm2368, %v2352
        %2379 = vst.msk [vmem:[%s241 + $0x3f] sm:$0xfe] %vm2365, %v2353
        %2380 = vst.msk [vmem:[%s241 + $0x47] sm:$0xff] %vm887, %v2354
        %2381 = vst.msk [vmem:[%s241 + $0x4f] sm:$0x1] %vm2368, %v2355
        %2382 = vst.msk [vmem:[%s241 + $0x4f] sm:$0xfe] %vm2365, %v2356
        %2383 = vst.msk [vmem:[%s241 + $0x57] sm:$0xff] %vm887, %v2357
        %2384 = vst.msk [vmem:[%s241 + $0x5f] sm:$0x1] %vm2368, %v2358
        %2385 = vst.msk [vmem:[%s241 + $0x5f] sm:$0xfe] %vm2365, %v2359
        %2386 = vst.msk [vmem:[%s241 + $0x67] sm:$0xff] %vm887, %v2360
        %2387 = vst.msk [vmem:[%s241 + $0x6f] sm:$0x1] %vm2368, %v2361
        %2388 = vst.msk [vmem:[%s241 + $0x6f] sm:$0xfe] %vm2365, %v2362
        %2389 = vst.msk [vmem:[%s241 + $0x77] sm:$0xff] %vm887, %v2363
        %2390 = vst.msk [vmem:[%s241 + $0x7f] sm:$0x1] %vm2368, %v2364
        %s2391 = sand.u32 %s153, 1
        %s2392 = scalar_lea.sflag [#allocation3], %s2391
        %s2393 = sand.u32 %s153, 1
        %s2394 = smul.addr %s2393, 128
        %s2395 = scalar_lea.vmem [#allocation2], %s2394
        // Predicated region
        $region41: #{tpu_custom_call.1} parent=39 // pred_check
          %p2396 = pneg %p163
        $region42: #{tpu_custom_call.1} parent=39 // pred_check_branch
          %2398 = sbr.rel (%p2396) target = $region44
        $region43: #{tpu_custom_call.1} parent=39 // pred_region
          %s2399 = smul.u32 8, %s24
          %2401 = vsyncadd %s2392, 0
          %s2402 = smul.addr %s2399, 2
          %s2403 = smul.addr %s23, 32
          %s2404 = sadd.s32 %s2402, %s2403
          %s2405 = smul.addr %s2404, 8
          %s2406 = scalar_lea.hbm %s5, %s2405
          %s2407 = sshll.u32 %s2395, 4
          %s2408 = int_to_ptr.vmem [resolvable:$true] %s2407
          %s2409 = sshll.u32 %s2406, 4
          %s2410 = int_to_ptr.hbm [resolvable:$true] %s2409
          %2415 = dma.vmem_to_hbm [thread:$0]  %s2408, 2048, %s2410, %s2392, 128, 128, 8
        $region44: #{tpu_custom_call.1} parent=39 // pred_fallthru
          _
      $region40: #{tpu_custom_call.1} parent=5 // pred_fallthru
        _
      %p2416 = scmp.le.s32.totalorder 2, %s14
      // Predicated region
      $region45: #{tpu_custom_call.1} parent=5 // pred_check
        %p2417 = pneg %p2416
      $region46: #{tpu_custom_call.1} parent=5 // pred_check_branch
        %2419 = sbr.rel (%p2417) target = $region48
      $region47: #{tpu_custom_call.1} parent=5 // pred_region
        %s2420 = ssub.s32 %s14, 2
        // Predicated region
        $region49: #{tpu_custom_call.1} parent=47 // pred_check
          %p2421 = pneg %p169
        $region50: #{tpu_custom_call.1} parent=47 // pred_check_branch
          %2423 = sbr.rel (%p2421) target = $region52
        $region51: #{tpu_custom_call.1} parent=47 // pred_region
          %s2424 = sand.u32 %s154, 1
          %s2425 = scalar_lea.sflag [#allocation3], %s2424
          %s2426 = sand.u32 %s154, 1
          %s2427 = smul.addr %s2426, 128
          %s2428 = scalar_lea.vmem [#allocation2], %s2427
          %2430 = dma.done %s2425, 2048
        $region52: #{tpu_custom_call.1} parent=47 // pred_fallthru
          _
      $region48: #{tpu_custom_call.1} parent=5 // pred_fallthru
        _
    $region6: #{tpu_custom_call.1} parent=1 // loop_footer
      %s18 = sadd.s32 1, %s14
    $region7: #{tpu_custom_call.1} parent=1 // loop_footer_branch
      %13 = sbr.rel target = $region3
    $region8: #{tpu_custom_call.1} parent=1 // loop_exit
      _
    %2431 = vsyncpa [#allocation3], 1
    %s2432 = scalar_lea.sflag [#allocation3], 1
    %2433 = vsyncpa %s2432, 1

</llo_original>
